<compile_context>
chip_gen: v6e
topology: v6e:2x2x1
jax: 0.10.0
libtpu: 0.0.40
codegen_flags: <defaults>
</compile_context>

<pallas_src>
import math

import numpy as np
import jax
import jax.numpy as jnp
from jax import lax
from jax.experimental import pallas as pl
from jax.experimental.pallas import tpu as pltpu


# ----------------------------------------------------------------------------
# Band-matrix construction (host/XLA-side weight preprocessing; done once)
# ----------------------------------------------------------------------------
def _band_matrices(w_flat, H, W):
    """Two (H*W, H*W) im2col weight matrices (avg plane, max plane) for the
    dilated 7x7 conv.  band[ch][i, j] = w[ch, ky, kx] whenever input flat
    index i = (y + 3*ky - 9)*W + (x + 3*kx - 9) feeds output flat index
    j = y*W + x; zero padding is implicit (out-of-range taps never appear)."""
    oy = np.repeat(np.arange(H), W)[None, :]       # output row, (1, HW)
    ox = np.tile(np.arange(W), H)[None, :]         # output col
    iy = np.repeat(np.arange(H), W)[:, None]       # input row,  (HW, 1)
    ix = np.tile(np.arange(W), H)[:, None]         # input col
    dy = iy - oy + 9                               # == 3*ky for a valid tap
    dx = ix - ox + 9                               # == 3*kx for a valid tap
    valid = ((dy >= 0) & (dy <= 18) & (dy % 3 == 0)
             & (dx >= 0) & (dx <= 18) & (dx % 3 == 0))
    tap = np.where(valid, (dy // 3) * 7 + (dx // 3), 0).astype(np.int32)
    tap = jnp.asarray(tap)
    valid = jnp.asarray(valid)
    bands = []
    for ch in range(2):                            # ch 0 = avg, ch 1 = max
        w_ch = w_flat[ch * 49:(ch + 1) * 49]       # (49,)
        bands.append(jnp.where(valid, w_ch[tap], 0.0).astype(jnp.float32))
    return bands


# ----------------------------------------------------------------------------
# Fused kernel: channel mean/max -> banded-matmul conv (MXU) -> sigmoid
# ----------------------------------------------------------------------------
def _make_kernel(group_sizes):
    n_groups = len(group_sizes)
    n_stages = sum(group_sizes)

    def kernel(b_ref, *refs):
        # b_ref : SMEM (1,) conv bias
        band_refs = refs[: 2 * n_groups]                       # (HW, HW) each
        t_refs = refs[2 * n_groups: 2 * n_groups + n_stages]   # (1, C_s, HW)
        out_refs = refs[2 * n_groups + n_stages:]              # (1, S, HW)
        bias = b_ref[0]

        stage = 0
        for g in range(n_groups):
            S = group_sizes[g]
            # Channel mean / max on lane-dense (1, C, HW) blocks.
            avg_rows, max_rows = [], []
            for s in range(S):
                x = t_refs[stage + s][...].astype(jnp.float32)   # (1, C_s, HW)
                avg_rows.append(jnp.mean(x, axis=1))             # (1, HW)
                max_rows.append(jnp.max(x, axis=1))              # (1, HW)
            avg_all = avg_rows[0] if S == 1 else jnp.concatenate(avg_rows, axis=0)
            max_all = max_rows[0] if S == 1 else jnp.concatenate(max_rows, axis=0)

            # Dilated 7x7 conv == two MXU matmuls against precomputed bands.
            acc = (jnp.dot(avg_all, band_refs[2 * g][...],
                           preferred_element_type=jnp.float32)
                   + jnp.dot(max_all, band_refs[2 * g + 1][...],
                             preferred_element_type=jnp.float32)
                   + bias)                                       # (S, HW)

            out_refs[g][...] = jax.nn.sigmoid(acc)[None]         # (1, S, HW)
            stage += S

    return kernel


def spatial_att_bridge(ts, w2d, b2d):
    """ts: list of 5 NCHW feature maps. Returns 5 attention maps (N, 1, H, W)."""
    w2d = jnp.asarray(w2d, jnp.float32).reshape(-1)   # (98,) = ch*49 + ky*7 + kx
    b2d = jnp.asarray(b2d, jnp.float32).reshape(-1)   # (1,)
    N = int(ts[0].shape[0])

    # Group stages by spatial resolution so the shared conv runs once per group.
    groups = {}
    for i, t in enumerate(ts):
        groups.setdefault((int(t.shape[2]), int(t.shape[3])), []).append(i)
    group_hw = list(groups.keys())
    group_idx = [groups[hw] for hw in group_hw]
    group_sizes = [len(idxs) for idxs in group_idx]
    order = [i for idxs in group_idx for i in idxs]

    # Lane-dense inputs: (N, C, H*W) (free reshape of contiguous dims).
    ts_flat = [ts[i].reshape(int(ts[i].shape[0]), int(ts[i].shape[1]), -1)
               for i in order]

    # Precompute the (HW, HW) band matrices for every resolution group.
    bands = []
    for (H, W) in group_hw:
        # Dense-band conv form is intended for the small MALUNet bridge maps;
        # for very large H*W switch to per-ky row-banded (W, W) matmuls.
        assert H * W <= 4096, "dense band form only for small spatial maps"
        bands.extend(_band_matrices(w2d, H, W))

    kernel = _make_kernel(group_sizes)

    in_specs = [pl.BlockSpec(memory_space=pltpu.MemorySpace.SMEM)]   # bias
    for (H, W) in group_hw:
        HW = H * W
        # Band matrices: same (full) block every grid step -> stay resident.
        in_specs += [pl.BlockSpec((HW, HW), lambda n: (0, 0))] * 2
    for t in ts_flat:
        C, HW = int(t.shape[1]), int(t.shape[2])
        in_specs.append(pl.BlockSpec((1, C, HW), lambda n: (n, 0, 0)))

    out_shape = tuple(
        jax.ShapeDtypeStruct((N, S, H * W), jnp.float32)
        for S, (H, W) in zip(group_sizes, group_hw))
    out_specs = tuple(
        pl.BlockSpec((1, S, H * W), lambda n: (n, 0, 0))
        for S, (H, W) in zip(group_sizes, group_hw))

    # Explicit VMEM budget: resident bands + double-buffered per-step blocks.
    band_bytes = sum(int(b.size) * 4 for b in bands)
    in_bytes = sum(int(t.shape[1]) * int(t.shape[2]) * 4 for t in ts_flat)
    out_bytes = sum(S * H * W * 4 for S, (H, W) in zip(group_sizes, group_hw))
    budget = 2 * (band_bytes + 2 * in_bytes + 2 * out_bytes) + (8 << 20)
    vmem_limit = int(min(96 << 20, max(32 << 20, budget)))

    group_outs = pl.pallas_call(
        kernel,
        grid=(N,),
        out_shape=out_shape,
        in_specs=in_specs,
        out_specs=out_specs,
        compiler_params=pltpu.CompilerParams(
            dimension_semantics=("parallel",),   # v7x: shard batch over 2 TCs
            vmem_limit_bytes=vmem_limit),
    )(b2d, *bands, *ts_flat)
    if not isinstance(group_outs, (tuple, list)):
        group_outs = (group_outs,)

    # Free layout plumbing: split group slabs back into per-stage (N, 1, H, W).
    atts = [None] * len(ts)
    for g, idxs in enumerate(group_idx):
        H, W = group_hw[g]
        og = group_outs[g]                                 # (N, S, H*W)
        for j, i in enumerate(idxs):
            atts[i] = og[:, j, :].reshape(N, 1, H, W)
    return tuple(atts)


# ----------------------------------------------------------------------------
# Pure-JAX reference (f32 ground truth for correctness check only)
# ----------------------------------------------------------------------------
def reference(ts, w2d, b2d):
    w = jnp.asarray(w2d, jnp.float32).reshape(1, 2, 7, 7)   # OIHW
    outs = []
    for t in ts:
        avg = jnp.mean(t, axis=1, keepdims=True)
        mx = jnp.max(t, axis=1, keepdims=True)
        x = jnp.concatenate([avg, mx], axis=1)
        y = lax.conv_general_dilated(
            x, w, window_strides=(1, 1), padding=((9, 9), (9, 9)),
            rhs_dilation=(3, 3), dimension_numbers=("NCHW", "OIHW", "NCHW"),
            precision=lax.Precision.HIGHEST)
        outs.append(jax.nn.sigmoid(y + b2d[0]))
    return outs


# ----------------------------------------------------------------------------
# Example run
# ----------------------------------------------------------------------------
if __name__ == "__main__":
    key = jax.random.PRNGKey(0)
    N = 2
    chans = [4, 8, 12, 16, 24]
    spatial = [(16, 16), (16, 16), (8, 8), (8, 8), (8, 8)]

    keys = jax.random.split(key, 7)
    ts = [jax.random.normal(keys[i], (N, c, h, w), jnp.float32)
          for i, (c, (h, w)) in enumerate(zip(chans, spatial))]
    # Conv2d(2, 1, 7) init (PyTorch-style uniform bounds). For real weights:
    # w2d = torch_conv.weight.reshape(-1)  (o=1, so index = ch*49 + ky*7 + kx).
    bnd = 1.0 / math.sqrt(2 * 7 * 7)
    w2d = jax.random.uniform(keys[5], (98,), jnp.float32, -bnd, bnd)
    b2d = jax.random.uniform(keys[6], (1,), jnp.float32, -bnd, bnd)

    atts = spatial_att_bridge(ts, w2d, b2d)
    atts = jax.block_until_ready(atts)

    refs = reference(ts, w2d, b2d)
    for a, r, t in zip(atts, refs, ts):
        assert a.shape == (t.shape[0], 1, t.shape[2], t.shape[3]), (a.shape, t.shape)
        assert bool(jnp.all(jnp.isfinite(a)))
        err = float(jnp.max(jnp.abs(a - r)))
        # Kernel uses default-precision MXU matmuls; reference is f32 HIGHEST.
        assert err < 2e-3, err

    print("KERNEL_OK")
</pallas_src>

<mosaic_0001>
module attributes {stable_mosaic.version = 11 : i64} {
  func.func @kernel(%arg0: i32, %arg1: memref<1xf32, #tpu.memory_space<smem>>, %arg2: memref<256x256xf32, #tpu.memory_space<vmem>>, %arg3: memref<256x256xf32, #tpu.memory_space<vmem>>, %arg4: memref<64x64xf32, #tpu.memory_space<vmem>>, %arg5: memref<64x64xf32, #tpu.memory_space<vmem>>, %arg6: memref<1x4x256xf32, #tpu.memory_space<vmem>>, %arg7: memref<1x8x256xf32, #tpu.memory_space<vmem>>, %arg8: memref<1x12x64xf32, #tpu.memory_space<vmem>>, %arg9: memref<1x16x64xf32, #tpu.memory_space<vmem>>, %arg10: memref<1x24x64xf32, #tpu.memory_space<vmem>>, %arg11: memref<1x2x256xf32, #tpu.memory_space<vmem>>, %arg12: memref<1x3x64xf32, #tpu.memory_space<vmem>>) attributes {dimension_semantics = [#tpu.dimension_semantics<parallel>], iteration_bounds = array<i64: 2>, scalar_prefetch = 0 : i64, scratch_operands = 0 : i64, tpu.core_type = #tpu.core_type<tc>, window_params = [{transform_indices = @transform_0, window_bounds = array<i64: 1>}, {pipeline_mode = #tpu.pipeline_mode<synchronous>, transform_indices = @transform_1, window_bounds = array<i64: 256, 256>}, {pipeline_mode = #tpu.pipeline_mode<synchronous>, transform_indices = @transform_2, window_bounds = array<i64: 256, 256>}, {pipeline_mode = #tpu.pipeline_mode<synchronous>, transform_indices = @transform_3, window_bounds = array<i64: 64, 64>}, {pipeline_mode = #tpu.pipeline_mode<synchronous>, transform_indices = @transform_4, window_bounds = array<i64: 64, 64>}, {transform_indices = @transform_5, window_bounds = array<i64: 1, 4, 256>}, {transform_indices = @transform_6, window_bounds = array<i64: 1, 8, 256>}, {transform_indices = @transform_7, window_bounds = array<i64: 1, 12, 64>}, {transform_indices = @transform_8, window_bounds = array<i64: 1, 16, 64>}, {transform_indices = @transform_9, window_bounds = array<i64: 1, 24, 64>}, {transform_indices = @transform_10, window_bounds = array<i64: 1, 2, 256>}, {transform_indices = @transform_11, window_bounds = array<i64: 1, 3, 64>}]} {
    %c0 = arith.constant 0 : index
    %0 = memref.load %arg1[%c0] : memref<1xf32, #tpu.memory_space<smem>>
    %c0_0 = arith.constant 0 : index
    %c0_1 = arith.constant 0 : index
    %c0_2 = arith.constant 0 : index
    %1 = vector.load %arg6[%c0_0, %c0_1, %c0_2] : memref<1x4x256xf32, #tpu.memory_space<vmem>>, vector<1x4x256xf32>
    %cst = arith.constant dense<0.000000e+00> : vector<1x256xf32>
    %2 = vector.multi_reduction <add>, %1, %cst [1] : vector<1x4x256xf32> to vector<1x256xf32>
    %cst_3 = arith.constant 4.000000e+00 : f32
    %3 = vector.broadcast %cst_3 : f32 to vector<1x256xf32>
    %4 = arith.divf %2, %3 : vector<1x256xf32>
    %cst_4 = arith.constant dense<0xFF800000> : vector<1x256xf32>
    %5 = vector.multi_reduction <maximumf>, %1, %cst_4 [1] : vector<1x4x256xf32> to vector<1x256xf32>
    %c0_5 = arith.constant 0 : index
    %c0_6 = arith.constant 0 : index
    %c0_7 = arith.constant 0 : index
    %6 = vector.load %arg7[%c0_5, %c0_6, %c0_7] : memref<1x8x256xf32, #tpu.memory_space<vmem>>, vector<1x8x256xf32>
    %cst_8 = arith.constant dense<0.000000e+00> : vector<1x256xf32>
    %7 = vector.multi_reduction <add>, %6, %cst_8 [1] : vector<1x8x256xf32> to vector<1x256xf32>
    %cst_9 = arith.constant 8.000000e+00 : f32
    %8 = vector.broadcast %cst_9 : f32 to vector<1x256xf32>
    %9 = arith.divf %7, %8 : vector<1x256xf32>
    %cst_10 = arith.constant dense<0xFF800000> : vector<1x256xf32>
    %10 = vector.multi_reduction <maximumf>, %6, %cst_10 [1] : vector<1x8x256xf32> to vector<1x256xf32>
    %11 = tpu.concatenate %4, %9 in 0 : vector<1x256xf32>, vector<1x256xf32> -> vector<2x256xf32>
    %12 = tpu.concatenate %5, %10 in 0 : vector<1x256xf32>, vector<1x256xf32> -> vector<2x256xf32>
    %c0_11 = arith.constant 0 : index
    %c0_12 = arith.constant 0 : index
    %13 = vector.load %arg2[%c0_11, %c0_12] : memref<256x256xf32, #tpu.memory_space<vmem>>, vector<256x256xf32>
    %cst_13 = arith.constant dense<0.000000e+00> : vector<2x256xf32>
    %14 = tpu.matmul %11, %13, %cst_13 {dimension_numbers = #tpu.dot_dimension_numbers<[1], [0], [0], [1], [0, 0, 1, 1], [], []>} : vector<2x256xf32>, vector<256x256xf32>, vector<2x256xf32> -> vector<2x256xf32>
    %c0_14 = arith.constant 0 : index
    %c0_15 = arith.constant 0 : index
    %15 = vector.load %arg3[%c0_14, %c0_15] : memref<256x256xf32, #tpu.memory_space<vmem>>, vector<256x256xf32>
    %cst_16 = arith.constant dense<0.000000e+00> : vector<2x256xf32>
    %16 = tpu.matmul %12, %15, %cst_16 {dimension_numbers = #tpu.dot_dimension_numbers<[1], [0], [0], [1], [0, 0, 1, 1], [], []>} : vector<2x256xf32>, vector<256x256xf32>, vector<2x256xf32> -> vector<2x256xf32>
    %17 = arith.addf %14, %16 : vector<2x256xf32>
    %18 = vector.broadcast %0 : f32 to vector<2x256xf32>
    %19 = arith.addf %17, %18 : vector<2x256xf32>
    %20 = arith.negf %19 : vector<2x256xf32>
    %21 = math.exp %20 : vector<2x256xf32>
    %cst_17 = arith.constant 1.000000e+00 : f32
    %22 = vector.broadcast %cst_17 : f32 to vector<2x256xf32>
    %23 = arith.addf %22, %21 : vector<2x256xf32>
    %24 = arith.divf %22, %23 : vector<2x256xf32>
    %25 = vector.shape_cast %24 : vector<2x256xf32> to vector<1x2x256xf32>
    %c0_18 = arith.constant 0 : index
    %c0_19 = arith.constant 0 : index
    %c0_20 = arith.constant 0 : index
    %26 = vector.load %arg11[%c0_18, %c0_19, %c0_20] : memref<1x2x256xf32, #tpu.memory_space<vmem>>, vector<1x2x256xf32>
    tpu.vector_store %arg11[%c0_18, %c0_19, %c0_20], %25 {strides = array<i32>} : memref<1x2x256xf32, #tpu.memory_space<vmem>>, vector<1x2x256xf32>,
    %c0_21 = arith.constant 0 : index
    %c0_22 = arith.constant 0 : index
    %c0_23 = arith.constant 0 : index
    %27 = vector.load %arg8[%c0_21, %c0_22, %c0_23] : memref<1x12x64xf32, #tpu.memory_space<vmem>>, vector<1x12x64xf32>
    %cst_24 = arith.constant dense<0.000000e+00> : vector<1x64xf32>
    %28 = vector.multi_reduction <add>, %27, %cst_24 [1] : vector<1x12x64xf32> to vector<1x64xf32>
    %cst_25 = arith.constant 1.200000e+01 : f32
    %29 = vector.broadcast %cst_25 : f32 to vector<1x64xf32>
    %30 = arith.divf %28, %29 : vector<1x64xf32>
    %cst_26 = arith.constant dense<0xFF800000> : vector<1x64xf32>
    %31 = vector.multi_reduction <maximumf>, %27, %cst_26 [1] : vector<1x12x64xf32> to vector<1x64xf32>
    %c0_27 = arith.constant 0 : index
    %c0_28 = arith.constant 0 : index
    %c0_29 = arith.constant 0 : index
    %32 = vector.load %arg9[%c0_27, %c0_28, %c0_29] : memref<1x16x64xf32, #tpu.memory_space<vmem>>, vector<1x16x64xf32>
    %cst_30 = arith.constant dense<0.000000e+00> : vector<1x64xf32>
    %33 = vector.multi_reduction <add>, %32, %cst_30 [1] : vector<1x16x64xf32> to vector<1x64xf32>
    %cst_31 = arith.constant 1.600000e+01 : f32
    %34 = vector.broadcast %cst_31 : f32 to vector<1x64xf32>
    %35 = arith.divf %33, %34 : vector<1x64xf32>
    %cst_32 = arith.constant dense<0xFF800000> : vector<1x64xf32>
    %36 = vector.multi_reduction <maximumf>, %32, %cst_32 [1] : vector<1x16x64xf32> to vector<1x64xf32>
    %c0_33 = arith.constant 0 : index
    %c0_34 = arith.constant 0 : index
    %c0_35 = arith.constant 0 : index
    %37 = vector.load %arg10[%c0_33, %c0_34, %c0_35] : memref<1x24x64xf32, #tpu.memory_space<vmem>>, vector<1x24x64xf32>
    %cst_36 = arith.constant dense<0.000000e+00> : vector<1x64xf32>
    %38 = vector.multi_reduction <add>, %37, %cst_36 [1] : vector<1x24x64xf32> to vector<1x64xf32>
    %cst_37 = arith.constant 2.400000e+01 : f32
    %39 = vector.broadcast %cst_37 : f32 to vector<1x64xf32>
    %40 = arith.divf %38, %39 : vector<1x64xf32>
    %cst_38 = arith.constant dense<0xFF800000> : vector<1x64xf32>
    %41 = vector.multi_reduction <maximumf>, %37, %cst_38 [1] : vector<1x24x64xf32> to vector<1x64xf32>
    %42 = tpu.concatenate %30, %35, %40 in 0 : vector<1x64xf32>, vector<1x64xf32>, vector<1x64xf32> -> vector<3x64xf32>
    %43 = tpu.concatenate %31, %36, %41 in 0 : vector<1x64xf32>, vector<1x64xf32>, vector<1x64xf32> -> vector<3x64xf32>
    %c0_39 = arith.constant 0 : index
    %c0_40 = arith.constant 0 : index
    %44 = vector.load %arg4[%c0_39, %c0_40] : memref<64x64xf32, #tpu.memory_space<vmem>>, vector<64x64xf32>
    %cst_41 = arith.constant dense<0.000000e+00> : vector<3x64xf32>
    %45 = tpu.matmul %42, %44, %cst_41 {dimension_numbers = #tpu.dot_dimension_numbers<[1], [0], [0], [1], [0, 0, 1, 1], [], []>} : vector<3x64xf32>, vector<64x64xf32>, vector<3x64xf32> -> vector<3x64xf32>
    %c0_42 = arith.constant 0 : index
    %c0_43 = arith.constant 0 : index
    %46 = vector.load %arg5[%c0_42, %c0_43] : memref<64x64xf32, #tpu.memory_space<vmem>>, vector<64x64xf32>
    %cst_44 = arith.constant dense<0.000000e+00> : vector<3x64xf32>
    %47 = tpu.matmul %43, %46, %cst_44 {dimension_numbers = #tpu.dot_dimension_numbers<[1], [0], [0], [1], [0, 0, 1, 1], [], []>} : vector<3x64xf32>, vector<64x64xf32>, vector<3x64xf32> -> vector<3x64xf32>
    %48 = arith.addf %45, %47 : vector<3x64xf32>
    %49 = vector.broadcast %0 : f32 to vector<3x64xf32>
    %50 = arith.addf %48, %49 : vector<3x64xf32>
    %51 = arith.negf %50 : vector<3x64xf32>
    %52 = math.exp %51 : vector<3x64xf32>
    %cst_45 = arith.constant 1.000000e+00 : f32
    %53 = vector.broadcast %cst_45 : f32 to vector<3x64xf32>
    %54 = arith.addf %53, %52 : vector<3x64xf32>
    %55 = arith.divf %53, %54 : vector<3x64xf32>
    %56 = vector.shape_cast %55 : vector<3x64xf32> to vector<1x3x64xf32>
    %c0_46 = arith.constant 0 : index
    %c0_47 = arith.constant 0 : index
    %c0_48 = arith.constant 0 : index
    %57 = vector.load %arg12[%c0_46, %c0_47, %c0_48] : memref<1x3x64xf32, #tpu.memory_space<vmem>>, vector<1x3x64xf32>
    tpu.vector_store %arg12[%c0_46, %c0_47, %c0_48], %56 {strides = array<i32>} : memref<1x3x64xf32, #tpu.memory_space<vmem>>, vector<1x3x64xf32>,
    return
  }
  func.func @transform_0(%arg0: i32) -> i32 {
    %c0_i32 = arith.constant 0 : i32
    %c0_i32_0 = arith.constant 0 : i32
    return %c0_i32 : i32
  }
  func.func @transform_1(%arg0: i32) -> (i32, i32) {
    %c0_i32 = arith.constant 0 : i32
    %c0_i32_0 = arith.constant 0 : i32
    %c0_i32_1 = arith.constant 0 : i32
    return %c0_i32, %c0_i32_0 : i32, i32
  }
  func.func @transform_2(%arg0: i32) -> (i32, i32) {
    %c0_i32 = arith.constant 0 : i32
    %c0_i32_0 = arith.constant 0 : i32
    %c0_i32_1 = arith.constant 0 : i32
    return %c0_i32, %c0_i32_0 : i32, i32
  }
  func.func @transform_3(%arg0: i32) -> (i32, i32) {
    %c0_i32 = arith.constant 0 : i32
    %c0_i32_0 = arith.constant 0 : i32
    %c0_i32_1 = arith.constant 0 : i32
    return %c0_i32, %c0_i32_0 : i32, i32
  }
  func.func @transform_4(%arg0: i32) -> (i32, i32) {
    %c0_i32 = arith.constant 0 : i32
    %c0_i32_0 = arith.constant 0 : i32
    %c0_i32_1 = arith.constant 0 : i32
    return %c0_i32, %c0_i32_0 : i32, i32
  }
  func.func @transform_5(%arg0: i32) -> (i32, i32, i32) {
    %c0_i32 = arith.constant 0 : i32
    %c0_i32_0 = arith.constant 0 : i32
    %c0_i32_1 = arith.constant 0 : i32
    return %arg0, %c0_i32, %c0_i32_0 : i32, i32, i32
  }
  func.func @transform_6(%arg0: i32) -> (i32, i32, i32) {
    %c0_i32 = arith.constant 0 : i32
    %c0_i32_0 = arith.constant 0 : i32
    %c0_i32_1 = arith.constant 0 : i32
    return %arg0, %c0_i32, %c0_i32_0 : i32, i32, i32
  }
  func.func @transform_7(%arg0: i32) -> (i32, i32, i32) {
    %c0_i32 = arith.constant 0 : i32
    %c0_i32_0 = arith.constant 0 : i32
    %c0_i32_1 = arith.constant 0 : i32
    return %arg0, %c0_i32, %c0_i32_0 : i32, i32, i32
  }
  func.func @transform_8(%arg0: i32) -> (i32, i32, i32) {
    %c0_i32 = arith.constant 0 : i32
    %c0_i32_0 = arith.constant 0 : i32
    %c0_i32_1 = arith.constant 0 : i32
    return %arg0, %c0_i32, %c0_i32_0 : i32, i32, i32
  }
  func.func @transform_9(%arg0: i32) -> (i32, i32, i32) {
    %c0_i32 = arith.constant 0 : i32
    %c0_i32_0 = arith.constant 0 : i32
    %c0_i32_1 = arith.constant 0 : i32
    return %arg0, %c0_i32, %c0_i32_0 : i32, i32, i32
  }
  func.func @transform_10(%arg0: i32) -> (i32, i32, i32) {
    %c0_i32 = arith.constant 0 : i32
    %c0_i32_0 = arith.constant 0 : i32
    %c0_i32_1 = arith.constant 0 : i32
    return %arg0, %c0_i32, %c0_i32_0 : i32, i32, i32
  }
  func.func @transform_11(%arg0: i32) -> (i32, i32, i32) {
    %c0_i32 = arith.constant 0 : i32
    %c0_i32_0 = arith.constant 0 : i32
    %c0_i32_1 = arith.constant 0 : i32
    return %arg0, %c0_i32, %c0_i32_0 : i32, i32, i32
  }
}

</mosaic_0001>

<llo_original>
// kernel: tpu_custom_call.1
$region0: #{tpu_custom_call.1}
  #allocation0 [shape = 'u32[]', space=smem, size = 0x4, offset = 0x4, fixed_abs, tag = 'smem constant byte address 0x4 - core index']
  #allocation1 [shape = 'u32[144,128]{1,0:T(1,128)}', space=vmem, size = 0x12000, scoped, tag = 'internal scratch']
  #allocation2 [shape = 'f32[1]{0:T(128)S(6)}', space=smem, size = 0x200, scoped, tag = 'scoped memory for tpu_custom_call.1']
  %s0 = inlined_call_operand.<no memory space> [shape: f32[1], index: 0, kind: input, shape index: {}]
  %s1 = inlined_call_operand.hbm [shape: f32[256,256], index: 1, kind: input, shape index: {}]
  %s2 = inlined_call_operand.hbm [shape: f32[256,256], index: 2, kind: input, shape index: {}]
  %s3 = inlined_call_operand.hbm [shape: f32[64,64], index: 3, kind: input, shape index: {}]
  %s4 = inlined_call_operand.hbm [shape: f32[64,64], index: 4, kind: input, shape index: {}]
  %s5 = inlined_call_operand.vmem [shape: f32[2,4,256], index: 5, kind: input, shape index: {}]
  %s6 = inlined_call_operand.hbm [shape: f32[2,8,256], index: 6, kind: input, shape index: {}]
  %s7 = inlined_call_operand.vmem [shape: f32[2,12,64], index: 7, kind: input, shape index: {}]
  %s8 = inlined_call_operand.hbm [shape: f32[2,16,64], index: 8, kind: input, shape index: {}]
  %s9 = inlined_call_operand.vmem [shape: f32[2,24,64], index: 9, kind: input, shape index: {}]
  %s10 = inlined_call_operand.hbm [shape: f32[2,2,256], index: 10, kind: output, shape index: {0}]
  %s11 = inlined_call_operand.vmem [shape: f32[2,3,64], index: 11, kind: output, shape index: {1}]
  %12 = xla_tuple %s10, %s11
  %s13 = sld [smem:[#allocation0]]
  $region105: #{tpu_custom_call.1} parent=0
    _
  %s15 = ssub.s32 1, %s13
  %s16 = scalar_select 0, %s15, %s13
  %17 = sst [smem:[#allocation2]] %s0
  $region1: #{tpu_custom_call.1} parent=0
    #allocation3 [shape = 'u8[262144]{0}', space=vmem, size = 0x40000, scoped, tag = 'input window, operand 1, single buffered']
    #allocation4 [shape = 's32[2]{0}', space=sflag, size = 0x8, scoped, tag = 'scoped memory for tpu_custom_call.1']
    #allocation5 [shape = 's32[2]{0}', space=sflag, size = 0x8, scoped, tag = 'scoped memory for tpu_custom_call.1']
    #allocation6 [shape = 'u8[262144]{0}', space=vmem, size = 0x40000, scoped, tag = 'input window, operand 2, single buffered']
    #allocation7 [shape = 's32[1]{0}', space=sflag, size = 0x4, scoped, tag = 'scoped memory for tpu_custom_call.1']
    #allocation8 [shape = 'u8[32768]{0}', space=vmem, size = 0x8000, scoped, tag = 'input window, operand 3, single buffered']
    #allocation9 [shape = 'u8[32768]{0}', space=vmem, size = 0x8000, scoped, tag = 'input window, operand 4, single buffered']
    #allocation10 [shape = 's32[1]{0}', space=sflag, size = 0x4, scoped, tag = 'scoped memory for tpu_custom_call.1']
    #allocation11 [shape = 'u8[16384]{0}', space=vmem, size = 0x4000, scoped, tag = 'input window, operand 6']
    #allocation12 [shape = 'u8[16384]{0}', space=vmem, size = 0x4000, scoped, tag = 'input window, operand 8']
    #allocation13 [shape = 'u8[4096]{0}', space=vmem, size = 0x1000, scoped, tag = 'output window, operand 0']
    %18 = vsyncpa [#allocation4], 0
    %19 = vsyncpa [#allocation7], 0
    %20 = vsyncpa [#allocation10], 0
    %21 = vsyncpa [#allocation5], 0
    %s22 = scalar_lea.sflag [#allocation5], 1
    %23 = vsyncpa %s22, 0
    loop: start=0, step=1, limit=4
    $region2: #{tpu_custom_call.1} parent=1 // loop_pre_header
      _
    $region3: #{tpu_custom_call.1} parent=1 // loop_header
      %s25 = sphi 0, %s29
      %p26 = scmp.ge.s32.totalorder %s25, 4
      %s33 = sphi 0, %s33
      %s35 = sphi 0, %s33
      %s36 = sphi 0, %s35
      %s50 = sphi 0, %s36
      %s54 = sphi 0, %s54
      %s56 = sphi 0, %s54
      %s57 = sphi 0, %s56
      %s71 = sphi 0, %s57
      %s75 = sphi 0, %s75
      %s77 = sphi 0, %s75
      %s78 = sphi 0, %s77
      %s92 = sphi 0, %s78
      %s96 = sphi 0, %s96
      %s98 = sphi 0, %s96
      %s99 = sphi 0, %s98
      %s113 = sphi 0, %s99
      %s117 = sphi 0, %s117
      %s119 = sphi 0, %s117
      %s120 = sphi 0, %s119
      %s134 = sphi 0, %s120
      %s140 = sphi 0, %s142
      %s143 = sphi 0, %s140
      %s144 = sphi 0, %s143
      %s160 = sphi 0, %s144
      %s166 = sphi 0, %s168
      %s169 = sphi 0, %s166
      %s170 = sphi 0, %s169
      %s186 = sphi 0, %s170
      %s192 = sphi 0, %s194
      %s195 = sphi 0, %s192
      %s196 = sphi 0, %s195
      %s212 = sphi 0, %s196
      %s218 = sphi 0, %s220
      %s221 = sphi 0, %s218
      %s222 = sphi 0, %s221
      %s238 = sphi 0, %s222
      %s244 = sphi 0, %s246
      %s247 = sphi 0, %s244
      %s248 = sphi 0, %s247
      %s264 = sphi 0, %s248
      %s270 = sphi 0, %s272
      %s273 = sphi 0, %s270
      %s274 = sphi 0, %s273
      %s290 = sphi 0, %s274
      %s296 = sphi 0, %s298
      %s299 = sphi 0, %s296
      %s300 = sphi 0, %s299
      %s316 = sphi 0, %s300
    $region4: #{tpu_custom_call.1} parent=1 // loop_header_branch
      %28 = sbr.rel (%p26) target = $region8
    $region5: #{tpu_custom_call.1} parent=1 // loop_body
      %s30 = ssub.s32 %s25, 1
      %s31 = ssub.s32 %s25, 2
      %s32 = sadd.s32 %s25, 1
      %s34 = sadd.s32 %s33, 1
      %p37 = scmp.eq.s32.totalorder %s25, 1
      %p38 = scmp.ne.s32.totalorder %s33, %s35
      %p39 = scmp.eq.s32.totalorder %s25, 0
      %p40 = por %p38, %p39
      %p41 = scmp.ne.s32.totalorder %s33, %s35
      %p42 = scmp.eq.s32.totalorder %s30, 1
      %p43 = por %p41, %p42
      %p44 = scmp.ne.s32.totalorder %s35, %s36
      %p45 = scmp.eq.s32.totalorder %s30, 0
      %p46 = por %p44, %p45
      %p47 = scmp.ne.s32.totalorder %s35, %s36
      %p48 = scmp.eq.s32.totalorder %s31, 1
      %p49 = por %p47, %p48
      %p51 = scmp.ne.s32.totalorder %s36, %s50
      %p52 = scmp.eq.s32.totalorder %s31, 0
      %p53 = por %p51, %p52
      %s55 = sadd.s32 %s54, 1
      %p58 = scmp.eq.s32.totalorder %s25, 1
      %p59 = scmp.ne.s32.totalorder %s54, %s56
      %p60 = scmp.eq.s32.totalorder %s25, 0
      %p61 = por %p59, %p60
      %p62 = scmp.ne.s32.totalorder %s54, %s56
      %p63 = scmp.eq.s32.totalorder %s30, 1
      %p64 = por %p62, %p63
      %p65 = scmp.ne.s32.totalorder %s56, %s57
      %p66 = scmp.eq.s32.totalorder %s30, 0
      %p67 = por %p65, %p66
      %p68 = scmp.ne.s32.totalorder %s56, %s57
      %p69 = scmp.eq.s32.totalorder %s31, 1
      %p70 = por %p68, %p69
      %p72 = scmp.ne.s32.totalorder %s57, %s71
      %p73 = scmp.eq.s32.totalorder %s31, 0
      %p74 = por %p72, %p73
      %s76 = sadd.s32 %s75, 1
      %p79 = scmp.eq.s32.totalorder %s25, 1
      %p80 = scmp.ne.s32.totalorder %s75, %s77
      %p81 = scmp.eq.s32.totalorder %s25, 0
      %p82 = por %p80, %p81
      %p83 = scmp.ne.s32.totalorder %s75, %s77
      %p84 = scmp.eq.s32.totalorder %s30, 1
      %p85 = por %p83, %p84
      %p86 = scmp.ne.s32.totalorder %s77, %s78
      %p87 = scmp.eq.s32.totalorder %s30, 0
      %p88 = por %p86, %p87
      %p89 = scmp.ne.s32.totalorder %s77, %s78
      %p90 = scmp.eq.s32.totalorder %s31, 1
      %p91 = por %p89, %p90
      %p93 = scmp.ne.s32.totalorder %s78, %s92
      %p94 = scmp.eq.s32.totalorder %s31, 0
      %p95 = por %p93, %p94
      %s97 = sadd.s32 %s96, 1
      %p100 = scmp.eq.s32.totalorder %s25, 1
      %p101 = scmp.ne.s32.totalorder %s96, %s98
      %p102 = scmp.eq.s32.totalorder %s25, 0
      %p103 = por %p101, %p102
      %p104 = scmp.ne.s32.totalorder %s96, %s98
      %p105 = scmp.eq.s32.totalorder %s30, 1
      %p106 = por %p104, %p105
      %p107 = scmp.ne.s32.totalorder %s98, %s99
      %p108 = scmp.eq.s32.totalorder %s30, 0
      %p109 = por %p107, %p108
      %p110 = scmp.ne.s32.totalorder %s98, %s99
      %p111 = scmp.eq.s32.totalorder %s31, 1
      %p112 = por %p110, %p111
      %p114 = scmp.ne.s32.totalorder %s99, %s113
      %p115 = scmp.eq.s32.totalorder %s31, 0
      %p116 = por %p114, %p115
      %s118 = sadd.s32 %s117, 1
      %p121 = scmp.eq.s32.totalorder %s25, 1
      %p122 = scmp.ne.s32.totalorder %s117, %s119
      %p123 = scmp.eq.s32.totalorder %s25, 0
      %p124 = por %p122, %p123
      %p125 = scmp.ne.s32.totalorder %s117, %s119
      %p126 = scmp.eq.s32.totalorder %s30, 1
      %p127 = por %p125, %p126
      %p128 = scmp.ne.s32.totalorder %s119, %s120
      %p129 = scmp.eq.s32.totalorder %s30, 0
      %p130 = por %p128, %p129
      %p131 = scmp.ne.s32.totalorder %s119, %s120
      %p132 = scmp.eq.s32.totalorder %s31, 1
      %p133 = por %p131, %p132
      %p135 = scmp.ne.s32.totalorder %s120, %s134
      %p136 = scmp.eq.s32.totalorder %s31, 0
      %p137 = por %p135, %p136
      %s138 = ssub.s32 %s25, %s32
      %p139 = scmp.eq.s32.totalorder %s138, 0
      %s141 = sadd.s32 %s140, 1
      %s142 = scalar_select %p139, %s140, %s141
      %p145 = pneg %p139
      %p146 = scmp.eq.s32.totalorder %s25, 1
      %p147 = por %p145, %p146
      %p148 = scmp.ne.s32.totalorder %s140, %s143
      %p149 = scmp.eq.s32.totalorder %s25, 0
      %p150 = por %p148, %p149
      %p151 = scmp.ne.s32.totalorder %s140, %s143
      %p152 = scmp.eq.s32.totalorder %s30, 1
      %p153 = por %p151, %p152
      %p154 = scmp.ne.s32.totalorder %s143, %s144
      %p155 = scmp.eq.s32.totalorder %s30, 0
      %p156 = por %p154, %p155
      %p157 = scmp.ne.s32.totalorder %s143, %s144
      %p158 = scmp.eq.s32.totalorder %s31, 1
      %p159 = por %p157, %p158
      %p161 = scmp.ne.s32.totalorder %s144, %s160
      %p162 = scmp.eq.s32.totalorder %s31, 0
      %p163 = por %p161, %p162
      %s164 = ssub.s32 %s25, %s32
      %p165 = scmp.eq.s32.totalorder %s164, 0
      %s167 = sadd.s32 %s166, 1
      %s168 = scalar_select %p165, %s166, %s167
      %p171 = pneg %p165
      %p172 = scmp.eq.s32.totalorder %s25, 1
      %p173 = por %p171, %p172
      %p174 = scmp.ne.s32.totalorder %s166, %s169
      %p175 = scmp.eq.s32.totalorder %s25, 0
      %p176 = por %p174, %p175
      %p177 = scmp.ne.s32.totalorder %s166, %s169
      %p178 = scmp.eq.s32.totalorder %s30, 1
      %p179 = por %p177, %p178
      %p180 = scmp.ne.s32.totalorder %s169, %s170
      %p181 = scmp.eq.s32.totalorder %s30, 0
      %p182 = por %p180, %p181
      %p183 = scmp.ne.s32.totalorder %s169, %s170
      %p184 = scmp.eq.s32.totalorder %s31, 1
      %p185 = por %p183, %p184
      %p187 = scmp.ne.s32.totalorder %s170, %s186
      %p188 = scmp.eq.s32.totalorder %s31, 0
      %p189 = por %p187, %p188
      %s190 = ssub.s32 %s25, %s32
      %p191 = scmp.eq.s32.totalorder %s190, 0
      %s193 = sadd.s32 %s192, 1
      %s194 = scalar_select %p191, %s192, %s193
      %p197 = pneg %p191
      %p198 = scmp.eq.s32.totalorder %s25, 1
      %p199 = por %p197, %p198
      %p200 = scmp.ne.s32.totalorder %s192, %s195
      %p201 = scmp.eq.s32.totalorder %s25, 0
      %p202 = por %p200, %p201
      %p203 = scmp.ne.s32.totalorder %s192, %s195
      %p204 = scmp.eq.s32.totalorder %s30, 1
      %p205 = por %p203, %p204
      %p206 = scmp.ne.s32.totalorder %s195, %s196
      %p207 = scmp.eq.s32.totalorder %s30, 0
      %p208 = por %p206, %p207
      %p209 = scmp.ne.s32.totalorder %s195, %s196
      %p210 = scmp.eq.s32.totalorder %s31, 1
      %p211 = por %p209, %p210
      %p213 = scmp.ne.s32.totalorder %s196, %s212
      %p214 = scmp.eq.s32.totalorder %s31, 0
      %p215 = por %p213, %p214
      %s216 = ssub.s32 %s25, %s32
      %p217 = scmp.eq.s32.totalorder %s216, 0
      %s219 = sadd.s32 %s218, 1
      %s220 = scalar_select %p217, %s218, %s219
      %p223 = pneg %p217
      %p224 = scmp.eq.s32.totalorder %s25, 1
      %p225 = por %p223, %p224
      %p226 = scmp.ne.s32.totalorder %s218, %s221
      %p227 = scmp.eq.s32.totalorder %s25, 0
      %p228 = por %p226, %p227
      %p229 = scmp.ne.s32.totalorder %s218, %s221
      %p230 = scmp.eq.s32.totalorder %s30, 1
      %p231 = por %p229, %p230
      %p232 = scmp.ne.s32.totalorder %s221, %s222
      %p233 = scmp.eq.s32.totalorder %s30, 0
      %p234 = por %p232, %p233
      %p235 = scmp.ne.s32.totalorder %s221, %s222
      %p236 = scmp.eq.s32.totalorder %s31, 1
      %p237 = por %p235, %p236
      %p239 = scmp.ne.s32.totalorder %s222, %s238
      %p240 = scmp.eq.s32.totalorder %s31, 0
      %p241 = por %p239, %p240
      %s242 = ssub.s32 %s25, %s32
      %p243 = scmp.eq.s32.totalorder %s242, 0
      %s245 = sadd.s32 %s244, 1
      %s246 = scalar_select %p243, %s244, %s245
      %p249 = pneg %p243
      %p250 = scmp.eq.s32.totalorder %s25, 1
      %p251 = por %p249, %p250
      %p252 = scmp.ne.s32.totalorder %s244, %s247
      %p253 = scmp.eq.s32.totalorder %s25, 0
      %p254 = por %p252, %p253
      %p255 = scmp.ne.s32.totalorder %s244, %s247
      %p256 = scmp.eq.s32.totalorder %s30, 1
      %p257 = por %p255, %p256
      %p258 = scmp.ne.s32.totalorder %s247, %s248
      %p259 = scmp.eq.s32.totalorder %s30, 0
      %p260 = por %p258, %p259
      %p261 = scmp.ne.s32.totalorder %s247, %s248
      %p262 = scmp.eq.s32.totalorder %s31, 1
      %p263 = por %p261, %p262
      %p265 = scmp.ne.s32.totalorder %s248, %s264
      %p266 = scmp.eq.s32.totalorder %s31, 0
      %p267 = por %p265, %p266
      %s268 = ssub.s32 %s25, %s32
      %p269 = scmp.eq.s32.totalorder %s268, 0
      %s271 = sadd.s32 %s270, 1
      %s272 = scalar_select %p269, %s270, %s271
      %p275 = pneg %p269
      %p276 = scmp.eq.s32.totalorder %s25, 1
      %p277 = por %p275, %p276
      %p278 = scmp.ne.s32.totalorder %s270, %s273
      %p279 = scmp.eq.s32.totalorder %s25, 0
      %p280 = por %p278, %p279
      %p281 = scmp.ne.s32.totalorder %s270, %s273
      %p282 = scmp.eq.s32.totalorder %s30, 1
      %p283 = por %p281, %p282
      %p284 = scmp.ne.s32.totalorder %s273, %s274
      %p285 = scmp.eq.s32.totalorder %s30, 0
      %p286 = por %p284, %p285
      %p287 = scmp.ne.s32.totalorder %s273, %s274
      %p288 = scmp.eq.s32.totalorder %s31, 1
      %p289 = por %p287, %p288
      %p291 = scmp.ne.s32.totalorder %s274, %s290
      %p292 = scmp.eq.s32.totalorder %s31, 0
      %p293 = por %p291, %p292
      %s294 = ssub.s32 %s25, %s32
      %p295 = scmp.eq.s32.totalorder %s294, 0
      %s297 = sadd.s32 %s296, 1
      %s298 = scalar_select %p295, %s296, %s297
      %p301 = pneg %p295
      %p302 = scmp.eq.s32.totalorder %s25, 1
      %p303 = por %p301, %p302
      %p304 = scmp.ne.s32.totalorder %s296, %s299
      %p305 = scmp.eq.s32.totalorder %s25, 0
      %p306 = por %p304, %p305
      %p307 = scmp.ne.s32.totalorder %s296, %s299
      %p308 = scmp.eq.s32.totalorder %s30, 1
      %p309 = por %p307, %p308
      %p310 = scmp.ne.s32.totalorder %s299, %s300
      %p311 = scmp.eq.s32.totalorder %s30, 0
      %p312 = por %p310, %p311
      %p313 = scmp.ne.s32.totalorder %s299, %s300
      %p314 = scmp.eq.s32.totalorder %s31, 1
      %p315 = por %p313, %p314
      %p317 = scmp.ne.s32.totalorder %s300, %s316
      %p318 = scmp.eq.s32.totalorder %s31, 0
      %p319 = por %p317, %p318
      %p320 = scmp.le.s32.totalorder 1, %s25
      %p321 = scmp.lt.s32.totalorder %s25, 3
      %p322 = pnand %p320, %p321
      %p323 = pneg %p322
      // Predicated region
      $region9: #{tpu_custom_call.1} parent=5 // pred_check
        _
      $region10: #{tpu_custom_call.1} parent=5 // pred_check_branch
        %325 = sbr.rel (%p322) target = $region12
      $region11: #{tpu_custom_call.1} parent=5 // pred_region
        %s326 = ssub.s32 %s25, 1
        // Predicated region
        $region13: #{tpu_custom_call.1} parent=11 // pred_check
          %p327 = pneg %p46
        $region14: #{tpu_custom_call.1} parent=11 // pred_check_branch
          %329 = sbr.rel (%p327) target = $region16
        $region15: #{tpu_custom_call.1} parent=11 // pred_region
          _
        $region16: #{tpu_custom_call.1} parent=11 // pred_fallthru
          _
        // Predicated region
        $region17: #{tpu_custom_call.1} parent=11 // pred_check
          %p330 = pneg %p67
        $region18: #{tpu_custom_call.1} parent=11 // pred_check_branch
          %332 = sbr.rel (%p330) target = $region20
        $region19: #{tpu_custom_call.1} parent=11 // pred_region
          %s334 = ssub.s32 8192, 8192
          %335 = vsyncadd [#allocation4], %s334
          %s336 = sshll.u32 [#allocation3], 4
          %s337 = int_to_ptr.vmem [resolvable:$true] %s336
          %342 = dma.hbm_to_vmem [thread:$0]  %s1, 8192, %s337, [#allocation4], 256, 256, 16
        $region20: #{tpu_custom_call.1} parent=11 // pred_fallthru
          _
        // Predicated region
        $region21: #{tpu_custom_call.1} parent=11 // pred_check
          %p343 = pneg %p88
        $region22: #{tpu_custom_call.1} parent=11 // pred_check_branch
          %345 = sbr.rel (%p343) target = $region24
        $region23: #{tpu_custom_call.1} parent=11 // pred_region
          %s347 = ssub.s32 8192, 8192
          %348 = vsyncadd [#allocation7], %s347
          %s349 = sshll.u32 [#allocation6], 4
          %s350 = int_to_ptr.vmem [resolvable:$true] %s349
          %355 = dma.hbm_to_vmem [thread:$0]  %s2, 8192, %s350, [#allocation7], 256, 256, 16
        $region24: #{tpu_custom_call.1} parent=11 // pred_fallthru
          _
        // Predicated region
        $region25: #{tpu_custom_call.1} parent=11 // pred_check
          %p356 = pneg %p109
        $region26: #{tpu_custom_call.1} parent=11 // pred_check_branch
          %358 = sbr.rel (%p356) target = $region28
        $region27: #{tpu_custom_call.1} parent=11 // pred_region
          %s360 = ssub.s32 1024, 1024
          %361 = vsyncadd [#allocation7], %s360
          %s362 = sshll.u32 [#allocation8], 4
          %s363 = int_to_ptr.vmem [resolvable:$true] %s362
          %368 = dma.hbm_to_vmem [thread:$0]  %s3, 1024, %s363, [#allocation7], 128, 128, 8
        $region28: #{tpu_custom_call.1} parent=11 // pred_fallthru
          _
        // Predicated region
        $region29: #{tpu_custom_call.1} parent=11 // pred_check
          %p369 = pneg %p130
        $region30: #{tpu_custom_call.1} parent=11 // pred_check_branch
          %371 = sbr.rel (%p369) target = $region32
        $region31: #{tpu_custom_call.1} parent=11 // pred_region
          %s373 = ssub.s32 1024, 1024
          %374 = vsyncadd [#allocation10], %s373
          %s375 = sshll.u32 [#allocation9], 4
          %s376 = int_to_ptr.vmem [resolvable:$true] %s375
          %381 = dma.hbm_to_vmem [thread:$0]  %s4, 1024, %s376, [#allocation10], 128, 128, 8
        $region32: #{tpu_custom_call.1} parent=11 // pred_fallthru
          _
      $region12: #{tpu_custom_call.1} parent=5 // pred_fallthru
        _
      %p382 = scmp.lt.s32.totalorder %s25, 2
      // Predicated region
      $region33: #{tpu_custom_call.1} parent=5 // pred_check
        %p383 = pneg %p382
      $region34: #{tpu_custom_call.1} parent=5 // pred_check_branch
        %385 = sbr.rel (%p383) target = $region36
      $region35: #{tpu_custom_call.1} parent=5 // pred_region
        // Predicated region
        $region37: #{tpu_custom_call.1} parent=35 // pred_check
          %p386 = pneg %p150
        $region38: #{tpu_custom_call.1} parent=35 // pred_check_branch
          %388 = sbr.rel (%p386) target = $region40
        $region39: #{tpu_custom_call.1} parent=35 // pred_region
          %p389 = scmp.lt.s32.totalorder %s25, 1
          %s390 = scalar_select %p389, %s25, 1
          %s391 = smul.addr %s390, 2
          %s392 = smul.addr %s391, 4
          %s393 = scalar_lea.vmem %s5, %s392
        $region40: #{tpu_custom_call.1} parent=35 // pred_fallthru
          _
        // Predicated region
        $region41: #{tpu_custom_call.1} parent=35 // pred_check
          %p394 = pneg %p176
        $region42: #{tpu_custom_call.1} parent=35 // pred_check_branch
          %396 = sbr.rel (%p394) target = $region44
        $region43: #{tpu_custom_call.1} parent=35 // pred_region
          %s397 = sand.u32 %s25, 1
          %s398 = scalar_lea.sflag [#allocation4], %s397
          %s399 = sand.u32 %s166, 1
          %s400 = smul.addr %s399, 16
          %s401 = scalar_lea.vmem [#allocation11], %s400
          %s403 = ssub.s32 256, 256
          %404 = vsyncadd %s398, %s403
          %s405 = smul.addr %s25, 2
          %s406 = smul.addr %s405, 128
          %s407 = scalar_lea.hbm %s6, %s406
          %s409 = sshll.u32 %s401, 4
          %s410 = int_to_ptr.vmem [resolvable:$true] %s409
          %412 = dma.hbm_to_vmem [thread:$0]  %s407, 256, %s410, %s398
        $region44: #{tpu_custom_call.1} parent=35 // pred_fallthru
          _
        // Predicated region
        $region45: #{tpu_custom_call.1} parent=35 // pred_check
          %p413 = pneg %p202
        $region46: #{tpu_custom_call.1} parent=35 // pred_check_branch
          %415 = sbr.rel (%p413) target = $region48
        $region47: #{tpu_custom_call.1} parent=35 // pred_region
          %p416 = scmp.lt.s32.totalorder %s25, 1
          %s417 = scalar_select %p416, %s25, 1
          %s418 = smul.addr %s417, 2
          %s419 = smul.addr %s418, 8
          %s420 = scalar_lea.vmem %s7, %s419
        $region48: #{tpu_custom_call.1} parent=35 // pred_fallthru
          _
        // Predicated region
        $region49: #{tpu_custom_call.1} parent=35 // pred_check
          %p421 = pneg %p228
        $region50: #{tpu_custom_call.1} parent=35 // pred_check_branch
          %423 = sbr.rel (%p421) target = $region52
        $region51: #{tpu_custom_call.1} parent=35 // pred_region
          %s424 = sand.u32 %s25, 1
          %s425 = scalar_lea.sflag [#allocation4], %s424
          %s426 = sand.u32 %s218, 1
          %s427 = smul.addr %s426, 16
          %s428 = scalar_lea.vmem [#allocation12], %s427
          %s430 = ssub.s32 256, 256
          %431 = vsyncadd %s425, %s430
          %s432 = smul.addr %s25, 2
          %s433 = smul.addr %s432, 128
          %s434 = scalar_lea.hbm %s8, %s433
          %s435 = sshll.u32 %s428, 4
          %s436 = int_to_ptr.vmem [resolvable:$true] %s435
          %441 = dma.hbm_to_vmem [thread:$0]  %s434, 256, %s436, %s425, 128, 128, 8
        $region52: #{tpu_custom_call.1} parent=35 // pred_fallthru
          _
        // Predicated region
        $region53: #{tpu_custom_call.1} parent=35 // pred_check
          %p442 = pneg %p254
        $region54: #{tpu_custom_call.1} parent=35 // pred_check_branch
          %444 = sbr.rel (%p442) target = $region56
        $region55: #{tpu_custom_call.1} parent=35 // pred_region
          %p445 = scmp.lt.s32.totalorder %s25, 1
          %s446 = scalar_select %p445, %s25, 1
          %s447 = smul.addr %s446, 3
          %s448 = smul.addr %s447, 8
          %s449 = scalar_lea.vmem %s9, %s448
        $region56: #{tpu_custom_call.1} parent=35 // pred_fallthru
          _
      $region36: #{tpu_custom_call.1} parent=5 // pred_fallthru
        _
      %p450 = scmp.le.s32.totalorder 1, %s25
      %p451 = scmp.lt.s32.totalorder %s25, 3
      %p452 = pnand %p450, %p451
      %p453 = pneg %p452
      // Predicated region
      $region57: #{tpu_custom_call.1} parent=5 // pred_check
        _
      $region58: #{tpu_custom_call.1} parent=5 // pred_check_branch
        %455 = sbr.rel (%p452) target = $region60
      $region59: #{tpu_custom_call.1} parent=5 // pred_region
        %s456 = ssub.s32 %s25, 1
        // Predicated region
        $region61: #{tpu_custom_call.1} parent=59 // pred_check
          %p457 = pneg %p67
        $region62: #{tpu_custom_call.1} parent=59 // pred_check_branch
          %459 = sbr.rel (%p457) target = $region64
        $region63: #{tpu_custom_call.1} parent=59 // pred_region
          %460 = dma.done [#allocation4], 8192
        $region64: #{tpu_custom_call.1} parent=59 // pred_fallthru
          _
        // Predicated region
        $region65: #{tpu_custom_call.1} parent=59 // pred_check
          %p461 = pneg %p88
        $region66: #{tpu_custom_call.1} parent=59 // pred_check_branch
          %463 = sbr.rel (%p461) target = $region68
        $region67: #{tpu_custom_call.1} parent=59 // pred_region
          %464 = dma.done [#allocation7], 8192
        $region68: #{tpu_custom_call.1} parent=59 // pred_fallthru
          _
        // Predicated region
        $region69: #{tpu_custom_call.1} parent=59 // pred_check
          %p465 = pneg %p109
        $region70: #{tpu_custom_call.1} parent=59 // pred_check_branch
          %467 = sbr.rel (%p465) target = $region72
        $region71: #{tpu_custom_call.1} parent=59 // pred_region
          %468 = dma.done [#allocation7], 1024
        $region72: #{tpu_custom_call.1} parent=59 // pred_fallthru
          _
        // Predicated region
        $region73: #{tpu_custom_call.1} parent=59 // pred_check
          %p469 = pneg %p130
        $region74: #{tpu_custom_call.1} parent=59 // pred_check_branch
          %471 = sbr.rel (%p469) target = $region76
        $region75: #{tpu_custom_call.1} parent=59 // pred_region
          %472 = dma.done [#allocation10], 1024
        $region76: #{tpu_custom_call.1} parent=59 // pred_fallthru
          _
        %s473 = sand.u32 %s30, 1
        %s474 = scalar_lea.sflag [#allocation4], %s473
        %s475 = sand.u32 %s169, 1
        %s476 = smul.addr %s475, 16
        %s477 = scalar_lea.vmem [#allocation11], %s476
        // Predicated region
        $region77: #{tpu_custom_call.1} parent=59 // pred_check
          %p478 = pneg %p182
        $region78: #{tpu_custom_call.1} parent=59 // pred_check_branch
          %480 = sbr.rel (%p478) target = $region80
        $region79: #{tpu_custom_call.1} parent=59 // pred_region
          %481 = dma.done %s474, 256
        $region80: #{tpu_custom_call.1} parent=59 // pred_fallthru
          _
        %s482 = sand.u32 %s30, 1
        %s483 = scalar_lea.sflag [#allocation4], %s482
        %s484 = sand.u32 %s221, 1
        %s485 = smul.addr %s484, 16
        %s486 = scalar_lea.vmem [#allocation12], %s485
        // Predicated region
        $region81: #{tpu_custom_call.1} parent=59 // pred_check
          %p487 = pneg %p234
        $region82: #{tpu_custom_call.1} parent=59 // pred_check_branch
          %489 = sbr.rel (%p487) target = $region84
        $region83: #{tpu_custom_call.1} parent=59 // pred_region
          %490 = dma.done %s483, 256
        $region84: #{tpu_custom_call.1} parent=59 // pred_fallthru
          _
        %p491 = pneg %p46
        %p492 = pneg %p43
        %p493 = pneg %p67
        %p494 = pneg %p64
        %p495 = pneg %p88
        %p496 = pneg %p85
        %p497 = pneg %p109
        %p498 = pneg %p106
        %p499 = pneg %p130
        %p500 = pneg %p127
        %p501 = scmp.lt.s32.totalorder %s30, 1
        %s502 = scalar_select %p501, %s30, 1
        %s503 = smul.addr %s502, 2
        %s504 = smul.addr %s503, 4
        %s505 = scalar_lea.vmem %s5, %s504
        %p506 = pneg %p156
        %p507 = pneg %p153
        %s508 = sand.u32 %s30, 1
        %s509 = scalar_lea.sflag [#allocation4], %s508
        %s510 = sand.u32 %s169, 1
        %s511 = smul.addr %s510, 16
        %s512 = scalar_lea.vmem [#allocation11], %s511
        %p513 = pneg %p182
        %p514 = pneg %p179
        %p515 = scmp.lt.s32.totalorder %s30, 1
        %s516 = scalar_select %p515, %s30, 1
        %s517 = smul.addr %s516, 2
        %s518 = smul.addr %s517, 8
        %s519 = scalar_lea.vmem %s7, %s518
        %p520 = pneg %p208
        %p521 = pneg %p205
        %s522 = sand.u32 %s30, 1
        %s523 = scalar_lea.sflag [#allocation4], %s522
        %s524 = sand.u32 %s221, 1
        %s525 = smul.addr %s524, 16
        %s526 = scalar_lea.vmem [#allocation12], %s525
        %p527 = pneg %p234
        %p528 = pneg %p231
        %p529 = scmp.lt.s32.totalorder %s30, 1
        %s530 = scalar_select %p529, %s30, 1
        %s531 = smul.addr %s530, 3
        %s532 = smul.addr %s531, 8
        %s533 = scalar_lea.vmem %s9, %s532
        %p534 = pneg %p260
        %p535 = pneg %p257
        %p536 = pneg %p286
        %p537 = pneg %p283
        %s538 = sand.u32 %s273, 1
        %s539 = scalar_lea.sflag [#allocation5], %s538
        %s540 = sand.u32 %s273, 1
        %s541 = smul.addr %s540, 4
        %s542 = scalar_lea.vmem [#allocation13], %s541
        %p543 = pneg %p312
        %p544 = pneg %p309
        %p545 = scmp.lt.s32.totalorder %s30, 1
        %s546 = scalar_select %p545, %s30, 1
        %s547 = smul.addr %s546, 4
        %s548 = scalar_lea.vmem %s11, %s547
        %p549 = scmp.lt.s32.totalorder %s30, 1
        %s550 = scalar_select %p549, %s30, 1
        %s551 = smul.addr %s550, 2
        %s552 = smul.addr %s551, 4
        %s553 = scalar_lea.vmem %s5, %s552
        %p554 = scmp.lt.s32.totalorder %s30, 1
        %s555 = scalar_select %p554, %s30, 1
        %s556 = smul.addr %s555, 2
        %s557 = smul.addr %s556, 8
        %s558 = scalar_lea.vmem %s7, %s557
        %p559 = scmp.lt.s32.totalorder %s30, 1
        %s560 = scalar_select %p559, %s30, 1
        %s561 = smul.addr %s560, 3
        %s562 = smul.addr %s561, 8
        %s563 = scalar_lea.vmem %s9, %s562
        %p564 = scmp.lt.s32.totalorder %s30, 1
        %s565 = scalar_select %p564, %s30, 1
        %s566 = smul.addr %s565, 4
        %s567 = scalar_lea.vmem %s11, %s566
        %s568 = sld [smem:[#allocation2]]
        %v569 = vld [vmem:[%s553] sm:$0xff]
        %v571 = vcombine.high %v569, %v569
        %vm573 = vcmask 1043456
        %v574 = vsel %vm573, %v569, 0.0
        %v575 = vrot.slane %v574, 4
        %v576 = vadd.f32 %v574, %v575
        %v577 = vrot.slane %v576, 2
        %v578 = vadd.f32 %v576, %v577
        %v579 = vrot.slane %v578, 1
        %v580 = vadd.f32 %v578, %v579
        %v581 = vsel %vm573, %v571, 0.0
        %v582 = vrot.slane %v581, 4
        %v583 = vadd.f32 %v581, %v582
        %v584 = vrot.slane %v583, 2
        %v585 = vadd.f32 %v583, %v584
        %v586 = vrot.slane %v585, 1
        %v587 = vadd.f32 %v585, %v586
        %v588 = vrcp.pop 4.0
        %v589 = vmul.f32 %v580, %v588
        %v590 = vmul.f32 %v587, %v588
        %v591 = vsel %vm573, %v569, -inf
        %v592 = vrot.slane %v591, 4
        %v593 = vmax.f32 %v591, %v592
        %v594 = vrot.slane %v593, 2
        %v595 = vmax.f32 %v593, %v594
        %v596 = vrot.slane %v595, 1
        %v597 = vmax.f32 %v595, %v596
        %v598 = vsel %vm573, %v571, -inf
        %v599 = vrot.slane %v598, 4
        %v600 = vmax.f32 %v598, %v599
        %v601 = vrot.slane %v600, 2
        %v602 = vmax.f32 %v600, %v601
        %v603 = vrot.slane %v602, 1
        %v604 = vmax.f32 %v602, %v603
        %v605 = vld [vmem:[%s477] sm:$0xff]
        %v606 = vld [vmem:[%s477 + $0x8] sm:$0xff]
        %v607 = vrot.slane %v605, 4
        %v608 = vadd.f32 %v605, %v607
        %v609 = vrot.slane %v608, 2
        %v610 = vadd.f32 %v608, %v609
        %v611 = vrot.slane %v610, 1
        %v612 = vadd.f32 %v610, %v611
        %v613 = vrot.slane %v606, 4
        %v614 = vadd.f32 %v606, %v613
        %v615 = vrot.slane %v614, 2
        %v616 = vadd.f32 %v614, %v615
        %v617 = vrot.slane %v616, 1
        %v618 = vadd.f32 %v616, %v617
        %v619 = vrcp.pop 8.0
        %v620 = vmul.f32 %v612, %v619
        %v621 = vmul.f32 %v618, %v619
        %v622 = vrot.slane %v605, 4
        %v623 = vmax.f32 %v605, %v622
        %v624 = vrot.slane %v623, 2
        %v625 = vmax.f32 %v623, %v624
        %v626 = vrot.slane %v625, 1
        %v627 = vmax.f32 %v625, %v626
        %v628 = vrot.slane %v606, 4
        %v629 = vmax.f32 %v606, %v628
        %v630 = vrot.slane %v629, 2
        %v631 = vmax.f32 %v629, %v630
        %v632 = vrot.slane %v631, 1
        %v633 = vmax.f32 %v631, %v632
        %vm634 = vcmask 1040384
        %v635 = vsel %vm634, %v589, %v620
        %v636 = vsel %vm634, %v590, %v621
        %v637 = vsel %vm634, %v597, %v627
        %v638 = vsel %vm634, %v604, %v633
        %v639 = vld [vmem:[#allocation3] sm:$0xff]
        %v640 = vld [vmem:[#allocation3 + $0x8] sm:$0xff]
        %v641 = vld [vmem:[#allocation3 + $0x10] sm:$0xff]
        %v642 = vld [vmem:[#allocation3 + $0x18] sm:$0xff]
        %v643 = vld [vmem:[#allocation3 + $0x20] sm:$0xff]
        %v644 = vld [vmem:[#allocation3 + $0x28] sm:$0xff]
        %v645 = vld [vmem:[#allocation3 + $0x30] sm:$0xff]
        %v646 = vld [vmem:[#allocation3 + $0x38] sm:$0xff]
        %v647 = vld [vmem:[#allocation3 + $0x40] sm:$0xff]
        %v648 = vld [vmem:[#allocation3 + $0x48] sm:$0xff]
        %v649 = vld [vmem:[#allocation3 + $0x50] sm:$0xff]
        %v650 = vld [vmem:[#allocation3 + $0x58] sm:$0xff]
        %v651 = vld [vmem:[#allocation3 + $0x60] sm:$0xff]
        %v652 = vld [vmem:[#allocation3 + $0x68] sm:$0xff]
        %v653 = vld [vmem:[#allocation3 + $0x70] sm:$0xff]
        %v654 = vld [vmem:[#allocation3 + $0x78] sm:$0xff]
        %v655 = vld [vmem:[#allocation3 + $0x80] sm:$0xff]
        %v656 = vld [vmem:[#allocation3 + $0x88] sm:$0xff]
        %v657 = vld [vmem:[#allocation3 + $0x90] sm:$0xff]
        %v658 = vld [vmem:[#allocation3 + $0x98] sm:$0xff]
        %v659 = vld [vmem:[#allocation3 + $0xa0] sm:$0xff]
        %v660 = vld [vmem:[#allocation3 + $0xa8] sm:$0xff]
        %v661 = vld [vmem:[#allocation3 + $0xb0] sm:$0xff]
        %v662 = vld [vmem:[#allocation3 + $0xb8] sm:$0xff]
        %v663 = vld [vmem:[#allocation3 + $0xc0] sm:$0xff]
        %v664 = vld [vmem:[#allocation3 + $0xc8] sm:$0xff]
        %v665 = vld [vmem:[#allocation3 + $0xd0] sm:$0xff]
        %v666 = vld [vmem:[#allocation3 + $0xd8] sm:$0xff]
        %v667 = vld [vmem:[#allocation3 + $0xe0] sm:$0xff]
        %v668 = vld [vmem:[#allocation3 + $0xe8] sm:$0xff]
        %v669 = vld [vmem:[#allocation3 + $0xf0] sm:$0xff]
        %v670 = vld [vmem:[#allocation3 + $0xf8] sm:$0xff]
        %v671 = vld [vmem:[#allocation3 + $0x100] sm:$0xff]
        %v672 = vld [vmem:[#allocation3 + $0x108] sm:$0xff]
        %v673 = vld [vmem:[#allocation3 + $0x110] sm:$0xff]
        %v674 = vld [vmem:[#allocation3 + $0x118] sm:$0xff]
        %v675 = vld [vmem:[#allocation3 + $0x120] sm:$0xff]
        %v676 = vld [vmem:[#allocation3 + $0x128] sm:$0xff]
        %v677 = vld [vmem:[#allocation3 + $0x130] sm:$0xff]
        %v678 = vld [vmem:[#allocation3 + $0x138] sm:$0xff]
        %v679 = vld [vmem:[#allocation3 + $0x140] sm:$0xff]
        %v680 = vld [vmem:[#allocation3 + $0x148] sm:$0xff]
        %v681 = vld [vmem:[#allocation3 + $0x150] sm:$0xff]
        %v682 = vld [vmem:[#allocation3 + $0x158] sm:$0xff]
        %v683 = vld [vmem:[#allocation3 + $0x160] sm:$0xff]
        %v684 = vld [vmem:[#allocation3 + $0x168] sm:$0xff]
        %v685 = vld [vmem:[#allocation3 + $0x170] sm:$0xff]
        %v686 = vld [vmem:[#allocation3 + $0x178] sm:$0xff]
        %v687 = vld [vmem:[#allocation3 + $0x180] sm:$0xff]
        %v688 = vld [vmem:[#allocation3 + $0x188] sm:$0xff]
        %v689 = vld [vmem:[#allocation3 + $0x190] sm:$0xff]
        %v690 = vld [vmem:[#allocation3 + $0x198] sm:$0xff]
        %v691 = vld [vmem:[#allocation3 + $0x1a0] sm:$0xff]
        %v692 = vld [vmem:[#allocation3 + $0x1a8] sm:$0xff]
        %v693 = vld [vmem:[#allocation3 + $0x1b0] sm:$0xff]
        %v694 = vld [vmem:[#allocation3 + $0x1b8] sm:$0xff]
        %v695 = vld [vmem:[#allocation3 + $0x1c0] sm:$0xff]
        %v696 = vld [vmem:[#allocation3 + $0x1c8] sm:$0xff]
        %v697 = vld [vmem:[#allocation3 + $0x1d0] sm:$0xff]
        %v698 = vld [vmem:[#allocation3 + $0x1d8] sm:$0xff]
        %v699 = vld [vmem:[#allocation3 + $0x1e0] sm:$0xff]
        %v700 = vld [vmem:[#allocation3 + $0x1e8] sm:$0xff]
        %v701 = vld [vmem:[#allocation3 + $0x1f0] sm:$0xff]
        %v702 = vld [vmem:[#allocation3 + $0x1f8] sm:$0xff]
        %v703 = vld [vmem:[#allocation6] sm:$0xff]
        %v704 = vld [vmem:[#allocation6 + $0x8] sm:$0xff]
        %v705 = vld [vmem:[#allocation6 + $0x10] sm:$0xff]
        %v706 = vld [vmem:[#allocation6 + $0x18] sm:$0xff]
        %v707 = vld [vmem:[#allocation6 + $0x20] sm:$0xff]
        %v708 = vld [vmem:[#allocation6 + $0x28] sm:$0xff]
        %v709 = vld [vmem:[#allocation6 + $0x30] sm:$0xff]
        %v710 = vld [vmem:[#allocation6 + $0x38] sm:$0xff]
        %v711 = vld [vmem:[#allocation6 + $0x40] sm:$0xff]
        %v712 = vld [vmem:[#allocation6 + $0x48] sm:$0xff]
        %v713 = vld [vmem:[#allocation6 + $0x50] sm:$0xff]
        %v714 = vld [vmem:[#allocation6 + $0x58] sm:$0xff]
        %v715 = vld [vmem:[#allocation6 + $0x60] sm:$0xff]
        %v716 = vld [vmem:[#allocation6 + $0x68] sm:$0xff]
        %v717 = vld [vmem:[#allocation6 + $0x70] sm:$0xff]
        %v718 = vld [vmem:[#allocation6 + $0x78] sm:$0xff]
        %v719 = vld [vmem:[#allocation6 + $0x80] sm:$0xff]
        %v720 = vld [vmem:[#allocation6 + $0x88] sm:$0xff]
        %v721 = vld [vmem:[#allocation6 + $0x90] sm:$0xff]
        %v722 = vld [vmem:[#allocation6 + $0x98] sm:$0xff]
        %v723 = vld [vmem:[#allocation6 + $0xa0] sm:$0xff]
        %v724 = vld [vmem:[#allocation6 + $0xa8] sm:$0xff]
        %v725 = vld [vmem:[#allocation6 + $0xb0] sm:$0xff]
        %v726 = vld [vmem:[#allocation6 + $0xb8] sm:$0xff]
        %v727 = vld [vmem:[#allocation6 + $0xc0] sm:$0xff]
        %v728 = vld [vmem:[#allocation6 + $0xc8] sm:$0xff]
        %v729 = vld [vmem:[#allocation6 + $0xd0] sm:$0xff]
        %v730 = vld [vmem:[#allocation6 + $0xd8] sm:$0xff]
        %v731 = vld [vmem:[#allocation6 + $0xe0] sm:$0xff]
        %v732 = vld [vmem:[#allocation6 + $0xe8] sm:$0xff]
        %v733 = vld [vmem:[#allocation6 + $0xf0] sm:$0xff]
        %v734 = vld [vmem:[#allocation6 + $0xf8] sm:$0xff]
        %v735 = vld [vmem:[#allocation6 + $0x100] sm:$0xff]
        %v736 = vld [vmem:[#allocation6 + $0x108] sm:$0xff]
        %v737 = vld [vmem:[#allocation6 + $0x110] sm:$0xff]
        %v738 = vld [vmem:[#allocation6 + $0x118] sm:$0xff]
        %v739 = vld [vmem:[#allocation6 + $0x120] sm:$0xff]
        %v740 = vld [vmem:[#allocation6 + $0x128] sm:$0xff]
        %v741 = vld [vmem:[#allocation6 + $0x130] sm:$0xff]
        %v742 = vld [vmem:[#allocation6 + $0x138] sm:$0xff]
        %v743 = vld [vmem:[#allocation6 + $0x140] sm:$0xff]
        %v744 = vld [vmem:[#allocation6 + $0x148] sm:$0xff]
        %v745 = vld [vmem:[#allocation6 + $0x150] sm:$0xff]
        %v746 = vld [vmem:[#allocation6 + $0x158] sm:$0xff]
        %v747 = vld [vmem:[#allocation6 + $0x160] sm:$0xff]
        %v748 = vld [vmem:[#allocation6 + $0x168] sm:$0xff]
        %v749 = vld [vmem:[#allocation6 + $0x170] sm:$0xff]
        %v750 = vld [vmem:[#allocation6 + $0x178] sm:$0xff]
        %v751 = vld [vmem:[#allocation6 + $0x180] sm:$0xff]
        %v752 = vld [vmem:[#allocation6 + $0x188] sm:$0xff]
        %v753 = vld [vmem:[#allocation6 + $0x190] sm:$0xff]
        %v754 = vld [vmem:[#allocation6 + $0x198] sm:$0xff]
        %v755 = vld [vmem:[#allocation6 + $0x1a0] sm:$0xff]
        %v756 = vld [vmem:[#allocation6 + $0x1a8] sm:$0xff]
        %v757 = vld [vmem:[#allocation6 + $0x1b0] sm:$0xff]
        %v758 = vld [vmem:[#allocation6 + $0x1b8] sm:$0xff]
        %v759 = vld [vmem:[#allocation6 + $0x1c0] sm:$0xff]
        %v760 = vld [vmem:[#allocation6 + $0x1c8] sm:$0xff]
        %v761 = vld [vmem:[#allocation6 + $0x1d0] sm:$0xff]
        %v762 = vld [vmem:[#allocation6 + $0x1d8] sm:$0xff]
        %v763 = vld [vmem:[#allocation6 + $0x1e0] sm:$0xff]
        %v764 = vld [vmem:[#allocation6 + $0x1e8] sm:$0xff]
        %v765 = vld [vmem:[#allocation6 + $0x1f0] sm:$0xff]
        %v766 = vld [vmem:[#allocation6 + $0x1f8] sm:$0xff]
        %767 = vmatprep.subr.mxu0 %v734
        %768 = vmatpush1.msra.mxu0 %v733
        %769 = vmatprep.subr.mxu0 %v732
        %770 = vmatpush1.msra.mxu0 %v731
        %771 = vmatprep.subr.mxu0 %v730
        %772 = vmatpush1.msra.mxu0 %v729
        %773 = vmatprep.subr.mxu0 %v728
        %774 = vmatpush1.msra.mxu0 %v727
        %775 = vmatprep.subr.mxu0 %v726
        %776 = vmatpush1.msra.mxu0 %v725
        %777 = vmatprep.subr.mxu0 %v724
        %778 = vmatpush1.msra.mxu0 %v723
        %779 = vmatprep.subr.mxu0 %v722
        %780 = vmatpush1.msra.mxu0 %v721
        %781 = vmatprep.subr.mxu0 %v720
        %782 = vmatpush1.msra.mxu0 %v719
        %783 = vmatprep.subr.mxu0 %v718
        %784 = vmatpush1.msra.mxu0 %v717
        %785 = vmatprep.subr.mxu0 %v716
        %786 = vmatpush1.msra.mxu0 %v715
        %787 = vmatprep.subr.mxu0 %v714
        %788 = vmatpush1.msra.mxu0 %v713
        %789 = vmatprep.subr.mxu0 %v712
        %790 = vmatpush1.msra.mxu0 %v711
        %791 = vmatprep.subr.mxu0 %v710
        %792 = vmatpush1.msra.mxu0 %v709
        %793 = vmatprep.subr.mxu0 %v708
        %794 = vmatpush1.msra.mxu0 %v707
        %795 = vmatprep.subr.mxu0 %v706
        %796 = vmatpush1.msra.mxu0 %v705
        %797 = vmatprep.subr.mxu0 %v704
        %798 = vmatpush1.msra.mxu0 %v703
        %799 = vmatprep.subr.mxu0 %v766
        %800 = vmatpush2.msra.mxu0 %v765
        %801 = vmatprep.subr.mxu0 %v764
        %802 = vmatpush2.msra.mxu0 %v763
        %803 = vmatprep.subr.mxu0 %v762
        %804 = vmatpush2.msra.mxu0 %v761
        %805 = vmatprep.subr.mxu0 %v760
        %806 = vmatpush2.msra.mxu0 %v759
        %807 = vmatprep.subr.mxu0 %v758
        %808 = vmatpush2.msra.mxu0 %v757
        %809 = vmatprep.subr.mxu0 %v756
        %810 = vmatpush2.msra.mxu0 %v755
        %811 = vmatprep.subr.mxu0 %v754
        %812 = vmatpush2.msra.mxu0 %v753
        %813 = vmatprep.subr.mxu0 %v752
        %814 = vmatpush2.msra.mxu0 %v751
        %815 = vmatprep.subr.mxu0 %v750
        %816 = vmatpush2.msra.mxu0 %v749
        %817 = vmatprep.subr.mxu0 %v748
        %818 = vmatpush2.msra.mxu0 %v747
        %819 = vmatprep.subr.mxu0 %v746
        %820 = vmatpush2.msra.mxu0 %v745
        %821 = vmatprep.subr.mxu0 %v744
        %822 = vmatpush2.msra.mxu0 %v743
        %823 = vmatprep.subr.mxu0 %v742
        %824 = vmatpush2.msra.mxu0 %v741
        %825 = vmatprep.subr.mxu0 %v740
        %826 = vmatpush2.msra.mxu0 %v739
        %827 = vmatprep.subr.mxu0 %v738
        %828 = vmatpush2.msra.mxu0 %v737
        %829 = vmatprep.subr.mxu0 %v736
        %830 = vmatpush2.msra.mxu0 %v735
        %831 = vmatprep.mubr.f32.mxu0 %v638
        %832 = vmatmul.mubr.f32.gmra.mxu0 %v637
        %v833 = vpop.f32.mrf.mxu0
        %v834 = vadd.f32 0.0, %v833
        %v835 = vpop.f32.mrf.mxu0
        %v836 = vadd.f32 0.0, %v835
        %837 = vdwg.mxu0
        %838 = vmatprep.subr.mxu0 %v670
        %839 = vmatpush1.msra.mxu0 %v669
        %840 = vmatprep.subr.mxu0 %v668
        %841 = vmatpush1.msra.mxu0 %v667
        %842 = vmatprep.subr.mxu0 %v666
        %843 = vmatpush1.msra.mxu0 %v665
        %844 = vmatprep.subr.mxu0 %v664
        %845 = vmatpush1.msra.mxu0 %v663
        %846 = vmatprep.subr.mxu0 %v662
        %847 = vmatpush1.msra.mxu0 %v661
        %848 = vmatprep.subr.mxu0 %v660
        %849 = vmatpush1.msra.mxu0 %v659
        %850 = vmatprep.subr.mxu0 %v658
        %851 = vmatpush1.msra.mxu0 %v657
        %852 = vmatprep.subr.mxu0 %v656
        %853 = vmatpush1.msra.mxu0 %v655
        %854 = vmatprep.subr.mxu0 %v654
        %855 = vmatpush1.msra.mxu0 %v653
        %856 = vmatprep.subr.mxu0 %v652
        %857 = vmatpush1.msra.mxu0 %v651
        %858 = vmatprep.subr.mxu0 %v650
        %859 = vmatpush1.msra.mxu0 %v649
        %860 = vmatprep.subr.mxu0 %v648
        %861 = vmatpush1.msra.mxu0 %v647
        %862 = vmatprep.subr.mxu0 %v646
        %863 = vmatpush1.msra.mxu0 %v645
        %864 = vmatprep.subr.mxu0 %v644
        %865 = vmatpush1.msra.mxu0 %v643
        %866 = vmatprep.subr.mxu0 %v642
        %867 = vmatpush1.msra.mxu0 %v641
        %868 = vmatprep.subr.mxu0 %v640
        %869 = vmatpush1.msra.mxu0 %v639
        %870 = vmatprep.subr.mxu0 %v702
        %871 = vmatpush2.msra.mxu0 %v701
        %872 = vmatprep.subr.mxu0 %v700
        %873 = vmatpush2.msra.mxu0 %v699
        %874 = vmatprep.subr.mxu0 %v698
        %875 = vmatpush2.msra.mxu0 %v697
        %876 = vmatprep.subr.mxu0 %v696
        %877 = vmatpush2.msra.mxu0 %v695
        %878 = vmatprep.subr.mxu0 %v694
        %879 = vmatpush2.msra.mxu0 %v693
        %880 = vmatprep.subr.mxu0 %v692
        %881 = vmatpush2.msra.mxu0 %v691
        %882 = vmatprep.subr.mxu0 %v690
        %883 = vmatpush2.msra.mxu0 %v689
        %884 = vmatprep.subr.mxu0 %v688
        %885 = vmatpush2.msra.mxu0 %v687
        %886 = vmatprep.subr.mxu0 %v686
        %887 = vmatpush2.msra.mxu0 %v685
        %888 = vmatprep.subr.mxu0 %v684
        %889 = vmatpush2.msra.mxu0 %v683
        %890 = vmatprep.subr.mxu0 %v682
        %891 = vmatpush2.msra.mxu0 %v681
        %892 = vmatprep.subr.mxu0 %v680
        %893 = vmatpush2.msra.mxu0 %v679
        %894 = vmatprep.subr.mxu0 %v678
        %895 = vmatpush2.msra.mxu0 %v677
        %896 = vmatprep.subr.mxu0 %v676
        %897 = vmatpush2.msra.mxu0 %v675
        %898 = vmatprep.subr.mxu0 %v674
        %899 = vmatpush2.msra.mxu0 %v673
        %900 = vmatprep.subr.mxu0 %v672
        %901 = vmatpush2.msra.mxu0 %v671
        %902 = vmatprep.mubr.f32.mxu0 %v636
        %903 = vmatmul.mubr.f32.gmra.mxu0 %v635
        %v904 = vpop.f32.mrf.mxu0
        %v905 = vadd.f32 %v834, %v904
        %v906 = vpop.f32.mrf.mxu0
        %v907 = vadd.f32 %v836, %v906
        %908 = vdwg.mxu0
        %v909 = vstv %s568
        %v910 = vadd.f32 %v905, %v909
        %v911 = vadd.f32 %v907, %v909
        %v912 = vxor.u32 %v910, 2147483648
        %v913 = vxor.u32 %v911, 2147483648
        %v914 = vmul.f32 %v912, 1.442695
        %v915 = vpow.pop %v914
        %v916 = vmul.f32 %v913, 1.442695
        %v917 = vpow.pop %v916
        %v918 = vadd.f32 %v915, 1.0
        %v919 = vadd.f32 %v917, 1.0
        %v920 = vrcp.pop %v918
        %v921 = vmul.f32 1.0, %v920
        %v922 = vrcp.pop %v919
        %v923 = vmul.f32 1.0, %v922
        %v926 = vcombine.low %v921, %v923
        %v928 = vunpack.c.l.s4 1983009808
        %v929 = vunpack.c.0.s8 %v928
        %v930 = vlaneseq
        %v931 = vshrl.u32 %v930, 7
        %v932 = vsub.s32 %v929, %v931
        %v933 = vrot.slane %v926, %v932
        %935 = vst [vmem:[%s542] sm:$0xf] %v933
        %v936 = vld [vmem:[%s558] sm:$0xff]
        %v937 = vld [vmem:[%s558 + $0x8] sm:$0xf]
        %vm938 = vcmask 523264
        %v939 = vsel %vm938, %v936, 0.0
        %vm940 = vcmask 519168
        %v941 = vsel %vm940, %v937, 0.0
        %v942 = vadd.f32 %v939, %v941
        %v943 = vrot.slane %v942, 4
        %v944 = vadd.f32 %v942, %v943
        %v945 = vrot.slane %v944, 2
        %v946 = vadd.f32 %v944, %v945
        %v947 = vrot.slane %v946, 1
        %v948 = vadd.f32 %v946, %v947
        %v949 = vrcp.pop 12.0
        %v950 = vmul.f32 %v948, %v949
        %v951 = vsel %vm938, %v936, -inf
        %v952 = vsel %vm940, %v937, -inf
        %v953 = vmax.f32 %v951, %v952
        %v954 = vrot.slane %v953, 4
        %v955 = vmax.f32 %v953, %v954
        %v956 = vrot.slane %v955, 2
        %v957 = vmax.f32 %v955, %v956
        %v958 = vrot.slane %v957, 1
        %v959 = vmax.f32 %v957, %v958
        %v960 = vld [vmem:[%s486] sm:$0xff]
        %v961 = vld [vmem:[%s486 + $0x8] sm:$0xff]
        %v962 = vsel %vm938, %v960, 0.0
        %v963 = vsel %vm938, %v961, 0.0
        %v964 = vadd.f32 %v962, %v963
        %v965 = vrot.slane %v964, 4
        %v966 = vadd.f32 %v964, %v965
        %v967 = vrot.slane %v966, 2
        %v968 = vadd.f32 %v966, %v967
        %v969 = vrot.slane %v968, 1
        %v970 = vadd.f32 %v968, %v969
        %v971 = vrcp.pop 16.0
        %v972 = vmul.f32 %v970, %v971
        %v973 = vsel %vm938, %v960, -inf
        %v974 = vsel %vm938, %v961, -inf
        %v975 = vmax.f32 %v973, %v974
        %v976 = vrot.slane %v975, 4
        %v977 = vmax.f32 %v975, %v976
        %v978 = vrot.slane %v977, 2
        %v979 = vmax.f32 %v977, %v978
        %v980 = vrot.slane %v979, 1
        %v981 = vmax.f32 %v979, %v980
        %v982 = vld [vmem:[%s563] sm:$0xff]
        %v983 = vld [vmem:[%s563 + $0x8] sm:$0xff]
        %v984 = vld [vmem:[%s563 + $0x10] sm:$0xff]
        %v985 = vsel %vm938, %v982, 0.0
        %v986 = vsel %vm938, %v983, 0.0
        %v987 = vadd.f32 %v985, %v986
        %v988 = vsel %vm938, %v984, 0.0
        %v989 = vadd.f32 %v987, %v988
        %v990 = vrot.slane %v989, 4
        %v991 = vadd.f32 %v989, %v990
        %v992 = vrot.slane %v991, 2
        %v993 = vadd.f32 %v991, %v992
        %v994 = vrot.slane %v993, 1
        %v995 = vadd.f32 %v993, %v994
        %v996 = vrcp.pop 24.0
        %v997 = vmul.f32 %v995, %v996
        %v998 = vsel %vm938, %v982, -inf
        %v999 = vsel %vm938, %v983, -inf
        %v1000 = vsel %vm938, %v984, -inf
        %v1001 = vmax.f32 %v998, %v999
        %v1002 = vmax.f32 %v1001, %v1000
        %v1003 = vrot.slane %v1002, 4
        %v1004 = vmax.f32 %v1002, %v1003
        %v1005 = vrot.slane %v1004, 2
        %v1006 = vmax.f32 %v1004, %v1005
        %v1007 = vrot.slane %v1006, 1
        %v1008 = vmax.f32 %v1006, %v1007
        %v1009 = vsel %vm634, %v950, %v972
        %vm1010 = vcmask 1041408
        %v1011 = vsel %vm1010, %v1009, %v997
        %v1012 = vsel %vm634, %v959, %v981
        %v1013 = vsel %vm1010, %v1012, %v1008
        %v1014 = vld [vmem:[#allocation8] sm:$0xff]
        %v1015 = vld [vmem:[#allocation8 + $0x8] sm:$0xff]
        %v1016 = vld [vmem:[#allocation8 + $0x10] sm:$0xff]
        %v1017 = vld [vmem:[#allocation8 + $0x18] sm:$0xff]
        %v1018 = vld [vmem:[#allocation8 + $0x20] sm:$0xff]
        %v1019 = vld [vmem:[#allocation8 + $0x28] sm:$0xff]
        %v1020 = vld [vmem:[#allocation8 + $0x30] sm:$0xff]
        %v1021 = vld [vmem:[#allocation8 + $0x38] sm:$0xff]
        %v1022 = vld [vmem:[#allocation9] sm:$0xff]
        %v1023 = vld [vmem:[#allocation9 + $0x8] sm:$0xff]
        %v1024 = vld [vmem:[#allocation9 + $0x10] sm:$0xff]
        %v1025 = vld [vmem:[#allocation9 + $0x18] sm:$0xff]
        %v1026 = vld [vmem:[#allocation9 + $0x20] sm:$0xff]
        %v1027 = vld [vmem:[#allocation9 + $0x28] sm:$0xff]
        %v1028 = vld [vmem:[#allocation9 + $0x30] sm:$0xff]
        %v1029 = vld [vmem:[#allocation9 + $0x38] sm:$0xff]
        %v1031 = vsel %vm938, %v1013, 0
        %1033 = vmatprep.subr.mxu0 0.0
        %1034 = vmatpush1.msra.mxu0 0.0
        %1035 = vmatprep.subr.mxu0 0.0
        %1036 = vmatpush1.msra.mxu0 0.0
        %1037 = vmatprep.subr.mxu0 0.0
        %1038 = vmatpush1.msra.mxu0 0.0
        %1039 = vmatprep.subr.mxu0 0.0
        %1040 = vmatpush1.msra.mxu0 0.0
        %1041 = vmatprep.subr.mxu0 0.0
        %1042 = vmatpush1.msra.mxu0 0.0
        %1043 = vmatprep.subr.mxu0 0.0
        %1044 = vmatpush1.msra.mxu0 0.0
        %1045 = vmatprep.subr.mxu0 0.0
        %1046 = vmatpush1.msra.mxu0 0.0
        %1047 = vmatprep.subr.mxu0 0.0
        %1048 = vmatpush1.msra.mxu0 0.0
        %1049 = vmatprep.subr.mxu0 0.0
        %1050 = vmatpush1.msra.mxu0 %v1029
        %1051 = vmatprep.subr.mxu0 0.0
        %1052 = vmatpush1.msra.mxu0 %v1028
        %1053 = vmatprep.subr.mxu0 0.0
        %1054 = vmatpush1.msra.mxu0 %v1027
        %1055 = vmatprep.subr.mxu0 0.0
        %1056 = vmatpush1.msra.mxu0 %v1026
        %1057 = vmatprep.subr.mxu0 0.0
        %1058 = vmatpush1.msra.mxu0 %v1025
        %1059 = vmatprep.subr.mxu0 0.0
        %1060 = vmatpush1.msra.mxu0 %v1024
        %1061 = vmatprep.subr.mxu0 0.0
        %1062 = vmatpush1.msra.mxu0 %v1023
        %1063 = vmatprep.subr.mxu0 0.0
        %1064 = vmatpush1.msra.mxu0 %v1022
        %1065 = vmatprep.subr.mxu0 0.0
        %1066 = vmatpush2.msra.mxu0 0.0
        %1067 = vmatprep.subr.mxu0 0.0
        %1068 = vmatpush2.msra.mxu0 0.0
        %1069 = vmatprep.subr.mxu0 0.0
        %1070 = vmatpush2.msra.mxu0 0.0
        %1071 = vmatprep.subr.mxu0 0.0
        %1072 = vmatpush2.msra.mxu0 0.0
        %1073 = vmatprep.subr.mxu0 0.0
        %1074 = vmatpush2.msra.mxu0 0.0
        %1075 = vmatprep.subr.mxu0 0.0
        %1076 = vmatpush2.msra.mxu0 0.0
        %1077 = vmatprep.subr.mxu0 0.0
        %1078 = vmatpush2.msra.mxu0 0.0
        %1079 = vmatprep.subr.mxu0 0.0
        %1080 = vmatpush2.msra.mxu0 0.0
        %1081 = vmatprep.subr.mxu0 0.0
        %1082 = vmatpush2.msra.mxu0 0.0
        %1083 = vmatprep.subr.mxu0 0.0
        %1084 = vmatpush2.msra.mxu0 0.0
        %1085 = vmatprep.subr.mxu0 0.0
        %1086 = vmatpush2.msra.mxu0 0.0
        %1087 = vmatprep.subr.mxu0 0.0
        %1088 = vmatpush2.msra.mxu0 0.0
        %1089 = vmatprep.subr.mxu0 0.0
        %1090 = vmatpush2.msra.mxu0 0.0
        %1091 = vmatprep.subr.mxu0 0.0
        %1092 = vmatpush2.msra.mxu0 0.0
        %1093 = vmatprep.subr.mxu0 0.0
        %1094 = vmatpush2.msra.mxu0 0.0
        %1095 = vmatprep.subr.mxu0 0.0
        %1096 = vmatpush2.msra.mxu0 0.0
        %1097 = vmatprep.mubr.f32.mxu0 0.0
        %1098 = vmatmul.mubr.f32.gmra.mxu0 %v1031
        %v1099 = vpop.f32.mrf.mxu0
        %v1100 = vadd.f32 0.0, %v1099
        %v1101 = vpop.f32.mrf.mxu0
        %1102 = vdwg.mxu0
        %v1104 = vsel %vm938, %v1011, 0
        %1106 = vmatprep.subr.mxu0 0.0
        %1107 = vmatpush1.msra.mxu0 0.0
        %1108 = vmatprep.subr.mxu0 0.0
        %1109 = vmatpush1.msra.mxu0 0.0
        %1110 = vmatprep.subr.mxu0 0.0
        %1111 = vmatpush1.msra.mxu0 0.0
        %1112 = vmatprep.subr.mxu0 0.0
        %1113 = vmatpush1.msra.mxu0 0.0
        %1114 = vmatprep.subr.mxu0 0.0
        %1115 = vmatpush1.msra.mxu0 0.0
        %1116 = vmatprep.subr.mxu0 0.0
        %1117 = vmatpush1.msra.mxu0 0.0
        %1118 = vmatprep.subr.mxu0 0.0
        %1119 = vmatpush1.msra.mxu0 0.0
        %1120 = vmatprep.subr.mxu0 0.0
        %1121 = vmatpush1.msra.mxu0 0.0
        %1122 = vmatprep.subr.mxu0 0.0
        %1123 = vmatpush1.msra.mxu0 %v1021
        %1124 = vmatprep.subr.mxu0 0.0
        %1125 = vmatpush1.msra.mxu0 %v1020
        %1126 = vmatprep.subr.mxu0 0.0
        %1127 = vmatpush1.msra.mxu0 %v1019
        %1128 = vmatprep.subr.mxu0 0.0
        %1129 = vmatpush1.msra.mxu0 %v1018
        %1130 = vmatprep.subr.mxu0 0.0
        %1131 = vmatpush1.msra.mxu0 %v1017
        %1132 = vmatprep.subr.mxu0 0.0
        %1133 = vmatpush1.msra.mxu0 %v1016
        %1134 = vmatprep.subr.mxu0 0.0
        %1135 = vmatpush1.msra.mxu0 %v1015
        %1136 = vmatprep.subr.mxu0 0.0
        %1137 = vmatpush1.msra.mxu0 %v1014
        %1138 = vmatprep.subr.mxu0 0.0
        %1139 = vmatpush2.msra.mxu0 0.0
        %1140 = vmatprep.subr.mxu0 0.0
        %1141 = vmatpush2.msra.mxu0 0.0
        %1142 = vmatprep.subr.mxu0 0.0
        %1143 = vmatpush2.msra.mxu0 0.0
        %1144 = vmatprep.subr.mxu0 0.0
        %1145 = vmatpush2.msra.mxu0 0.0
        %1146 = vmatprep.subr.mxu0 0.0
        %1147 = vmatpush2.msra.mxu0 0.0
        %1148 = vmatprep.subr.mxu0 0.0
        %1149 = vmatpush2.msra.mxu0 0.0
        %1150 = vmatprep.subr.mxu0 0.0
        %1151 = vmatpush2.msra.mxu0 0.0
        %1152 = vmatprep.subr.mxu0 0.0
        %1153 = vmatpush2.msra.mxu0 0.0
        %1154 = vmatprep.subr.mxu0 0.0
        %1155 = vmatpush2.msra.mxu0 0.0
        %1156 = vmatprep.subr.mxu0 0.0
        %1157 = vmatpush2.msra.mxu0 0.0
        %1158 = vmatprep.subr.mxu0 0.0
        %1159 = vmatpush2.msra.mxu0 0.0
        %1160 = vmatprep.subr.mxu0 0.0
        %1161 = vmatpush2.msra.mxu0 0.0
        %1162 = vmatprep.subr.mxu0 0.0
        %1163 = vmatpush2.msra.mxu0 0.0
        %1164 = vmatprep.subr.mxu0 0.0
        %1165 = vmatpush2.msra.mxu0 0.0
        %1166 = vmatprep.subr.mxu0 0.0
        %1167 = vmatpush2.msra.mxu0 0.0
        %1168 = vmatprep.subr.mxu0 0.0
        %1169 = vmatpush2.msra.mxu0 0.0
        %1170 = vmatprep.mubr.f32.mxu0 0.0
        %1171 = vmatmul.mubr.f32.gmra.mxu0 %v1104
        %v1172 = vpop.f32.mrf.mxu0
        %v1173 = vadd.f32 %v1100, %v1172
        %v1174 = vpop.f32.mrf.mxu0
        %1175 = vdwg.mxu0
        %v1176 = vadd.f32 %v1173, %v909
        %v1177 = vxor.u32 %v1176, 2147483648
        %v1178 = vmul.f32 %v1177, 1.442695
        %v1179 = vpow.pop %v1178
        %v1180 = vadd.f32 %v1179, 1.0
        %v1181 = vrcp.pop %v1180
        %v1182 = vmul.f32 1.0, %v1181
        %vm1183 = vcmask 518144
        %1184 = vst.msk [vmem:[%s567] sm:$0x7] %vm1183, %v1182
        %s1185 = sand.u32 %s273, 1
        %s1186 = scalar_lea.sflag [#allocation5], %s1185
        %s1187 = sand.u32 %s273, 1
        %s1188 = smul.addr %s1187, 4
        %s1189 = scalar_lea.vmem [#allocation13], %s1188
        %p1190 = scmp.lt.s32.totalorder %s30, 1
        %s1191 = scalar_select %p1190, %s30, 1
        %s1192 = smul.addr %s1191, 4
        %s1193 = scalar_lea.vmem %s11, %s1192
        // Predicated region
        $region85: #{tpu_custom_call.1} parent=59 // pred_check
          %p1194 = pneg %p283
        $region86: #{tpu_custom_call.1} parent=59 // pred_check_branch
          %1196 = sbr.rel (%p1194) target = $region88
        $region87: #{tpu_custom_call.1} parent=59 // pred_region
          %s1198 = ssub.s32 64, 64
          %1199 = vsyncadd %s1186, %s1198
          %s1200 = smul.addr %s30, 2
          %s1201 = smul.addr %s1200, 32
          %s1202 = scalar_lea.hbm %s10, %s1201
          %s1204 = sshll.u32 %s1189, 4
          %s1205 = int_to_ptr.vmem [resolvable:$true] %s1204
          %1207 = dma.vmem_to_hbm [thread:$0]  %s1205, 64, %s1202, %s1186
        $region88: #{tpu_custom_call.1} parent=59 // pred_fallthru
          _
        // Predicated region
        $region89: #{tpu_custom_call.1} parent=59 // pred_check
          %p1208 = pneg %p309
        $region90: #{tpu_custom_call.1} parent=59 // pred_check_branch
          %1210 = sbr.rel (%p1208) target = $region92
        $region91: #{tpu_custom_call.1} parent=59 // pred_region
          _
        $region92: #{tpu_custom_call.1} parent=59 // pred_fallthru
          _
      $region60: #{tpu_custom_call.1} parent=5 // pred_fallthru
        _
      %p1211 = scmp.le.s32.totalorder 2, %s25
      // Predicated region
      $region93: #{tpu_custom_call.1} parent=5 // pred_check
        %p1212 = pneg %p1211
      $region94: #{tpu_custom_call.1} parent=5 // pred_check_branch
        %1214 = sbr.rel (%p1212) target = $region96
      $region95: #{tpu_custom_call.1} parent=5 // pred_region
        %s1215 = ssub.s32 %s25, 2
        // Predicated region
        $region97: #{tpu_custom_call.1} parent=95 // pred_check
          %p1216 = pneg %p289
        $region98: #{tpu_custom_call.1} parent=95 // pred_check_branch
          %1218 = sbr.rel (%p1216) target = $region100
        $region99: #{tpu_custom_call.1} parent=95 // pred_region
          %s1219 = sand.u32 %s274, 1
          %s1220 = scalar_lea.sflag [#allocation5], %s1219
          %s1221 = sand.u32 %s274, 1
          %s1222 = smul.addr %s1221, 4
          %s1223 = scalar_lea.vmem [#allocation13], %s1222
          %1224 = dma.done %s1220, 64
        $region100: #{tpu_custom_call.1} parent=95 // pred_fallthru
          _
        // Predicated region
        $region101: #{tpu_custom_call.1} parent=95 // pred_check
          %p1225 = pneg %p315
        $region102: #{tpu_custom_call.1} parent=95 // pred_check_branch
          %1227 = sbr.rel (%p1225) target = $region104
        $region103: #{tpu_custom_call.1} parent=95 // pred_region
          %p1228 = scmp.lt.s32.totalorder %s31, 1
          %s1229 = scalar_select %p1228, %s31, 1
          %s1230 = smul.addr %s1229, 4
          %s1231 = scalar_lea.vmem %s11, %s1230
        $region104: #{tpu_custom_call.1} parent=95 // pred_fallthru
          _
      $region96: #{tpu_custom_call.1} parent=5 // pred_fallthru
        _
    $region6: #{tpu_custom_call.1} parent=1 // loop_footer
      %s29 = sadd.s32 1, %s25
    $region7: #{tpu_custom_call.1} parent=1 // loop_footer_branch
      %24 = sbr.rel target = $region3
    $region8: #{tpu_custom_call.1} parent=1 // loop_exit
      _
    %1232 = vsyncpa [#allocation4], 1
    %s1233 = scalar_lea.sflag [#allocation4], 1
    %1234 = vsyncpa %s1233, 1
    %1235 = vsyncpa [#allocation7], 1
    %1236 = vsyncpa [#allocation10], 1
    %1237 = vsyncpa [#allocation5], 1
    %s1238 = scalar_lea.sflag [#allocation5], 1
    %1239 = vsyncpa %s1238, 1

</llo_original>
